<compile_context>
chip_gen: v7x
topology: tpu7x:2x2x1
jax: 0.10.0
libtpu: 0.0.40
codegen_flags: <defaults>
</compile_context>

<pallas_src>
import functools

import jax
import jax.numpy as jnp
from jax.experimental import pallas as pl
from jax.experimental.pallas import tpu as pltpu

C_PAD = 128   # lane-dense channel padding
H_PAD = 128   # lane-dense hidden padding
SUB = 16      # bf16 sublane packing -> row offsets multiple of 16 are aligned


# -----------------------------------------------------------------------------
# Fused encoder kernel (Bb batch elements per grid step)
# -----------------------------------------------------------------------------
def _encoder_kernel(*refs, blocks, n_w, T, Bb, PADA, SEG):
    """refs = (x_ref, *weight_refs, o_ref, buf_in, buf_tmp).

    Buffer layout (both scratch buffers, bf16, shape (Bb*SEG, C_PAD)):
      batch b rows [b*SEG, b*SEG+PADA)        : zeros (causal prefix/separator)
      batch b rows [b*SEG+PADA, b*SEG+PADA+T) : activations
    A dilated causal tap with shift s for every batch element simultaneously
    is the global slice buf[PADA-s : PADA-s+M, :] with M = Bb*SEG - PADA.
    """
    x_ref = refs[0]
    w = refs[1:1 + n_w]
    o_ref = refs[1 + n_w]
    buf_in = refs[2 + n_w]
    buf_tmp = refs[3 + n_w]

    cpad = buf_in.shape[1]
    hpad = o_ref.shape[2]
    M = Bb * SEG - PADA
    zeros_sep = jnp.zeros((PADA, cpad), jnp.bfloat16)

    # Zero all causal prefixes / separator rows once per grid step; activation
    # rows are always written before they are read.
    buf_in[0:PADA, :] = zeros_sep
    buf_tmp[0:PADA, :] = zeros_sep
    for b in range(1, Bb):
        buf_in[b * SEG:b * SEG + PADA, :] = zeros_sep
        buf_tmp[b * SEG:b * SEG + PADA, :] = zeros_sep

    # Stage the input block into per-batch activation rows (cast once to bf16).
    for b in range(Bb):
        buf_in[b * SEG + PADA:b * SEG + PADA + T, :] = (
            x_ref[b].astype(jnp.bfloat16))

    def rezero_separators(buf):
        # A full-slab write of rows [PADA, Bb*SEG) clobbers the separator rows
        # of batches 1..Bb-1 with garbage -> restore the zeros the shifted taps
        # of the next conv rely on.
        for b in range(1, Bb):
            buf[b * SEG:b * SEG + PADA, :] = zeros_sep

    def conv(buf, w_ref, b_ref, shifts, reg_tap=None):
        # Lane-stack the K causally shifted taps into one
        # (M, K*128) @ (K*128, 128) MXU matmul (bf16 operands, f32 accumulate).
        # The shift-0 tap may be supplied from registers (reg_tap).
        cols = []
        for s in shifts:
            if s == 0 and reg_tap is not None:
                cols.append(reg_tap)
            else:
                cols.append(buf[PADA - s:PADA - s + M, :])
        xk = cols[0] if len(cols) == 1 else jnp.concatenate(cols, axis=-1)
        return jnp.dot(xk, w_ref[...],
                       preferred_element_type=jnp.float32) + b_ref[...]

    i = 0
    for blk in blocks:
        shifts = blk["shifts"]
        w1, b1, w2, b2 = w[i], w[i + 1], w[i + 2], w[i + 3]
        i += 4

        # conv1 (dilated causal, chomped) + bias + ReLU   [dropout = identity]
        h1 = jnp.maximum(conv(buf_in, w1, b1, shifts), 0.0)
        h1_b = h1.astype(jnp.bfloat16)            # reused as conv2's s=0 tap
        buf_tmp[PADA:PADA + M, :] = h1_b
        rezero_separators(buf_tmp)

        # residual branch (1x1 downsample conv when channel counts differ)
        if blk["has_down"]:
            wd, bd = w[i], w[i + 1]
            i += 2
            res = jnp.dot(buf_in[PADA:PADA + M, :], wd[...],
                          preferred_element_type=jnp.float32) + bd[...]
        else:
            res = buf_in[PADA:PADA + M, :].astype(jnp.float32)

        # conv2 + bias + ReLU, add residual, final ReLU — fused in registers
        h2 = jnp.maximum(conv(buf_tmp, w2, b2, shifts, reg_tap=h1_b), 0.0)
        out = jnp.maximum(h2 + res, 0.0)
        buf_in[PADA:PADA + M, :] = out.astype(jnp.bfloat16)
        rezero_separators(buf_in)

    # ---- tail: fc_feature, last-timestep slice, fc_time (VPU weighted sum)
    w_feat, b_feat, w_time, b_time = w[i], w[i + 1], w[i + 2], w[i + 3]
    feat = jnp.dot(buf_in[PADA:PADA + M, :], w_feat[...],
                   preferred_element_type=jnp.float32) + b_feat[...]  # (M,Hp)
    wt = w_time[...]                      # (T, H_PAD) f32, lane-replicated
    bt = b_time[...]                      # (1, H_PAD) f32, lane-replicated
    for b in range(Bb):
        fb = feat[b * SEG:b * SEG + T, :]                   # (T, H_PAD)
        h_last = fb[T - 1:T, :]                             # (1, H_PAD)
        c = jnp.sum(fb * wt, axis=0, keepdims=True) + bt    # (1, H_PAD)
        o_ref[b:b + 1, 0:1, :] = h_last.reshape(1, 1, hpad).astype(o_ref.dtype)
        o_ref[b:b + 1, 1:2, :] = c.reshape(1, 1, hpad).astype(o_ref.dtype)


# -----------------------------------------------------------------------------
# Parameter packing: pad channels to 128 lanes, stack conv taps, cast to bf16
# -----------------------------------------------------------------------------
def _pack_params(params, cpad=C_PAD, hpad=H_PAD):
    def pad2(a, r, c):
        return jnp.pad(a, ((0, r - a.shape[0]), (0, c - a.shape[1])))

    weights, meta = [], []
    for blk in params["tcn"]:
        K, d = blk["K"], blk["dilation"]
        shifts = tuple((K - 1 - k) * d for k in range(K))

        def stack_taps(wkio):  # (K, Cin, Cout) -> (K*cpad, cpad) bf16
            kk, cin, cout = wkio.shape
            wp = jnp.pad(wkio, ((0, 0), (0, cpad - cin), (0, cpad - cout)))
            return wp.reshape(kk * cpad, cpad).astype(jnp.bfloat16)

        weights += [stack_taps(blk["w1"]), pad2(blk["b1"], 1, cpad),
                    stack_taps(blk["w2"]), pad2(blk["b2"], 1, cpad)]
        has_down = blk["wd"] is not None
        if has_down:
            weights += [pad2(blk["wd"][0], cpad, cpad).astype(jnp.bfloat16),
                        pad2(blk["bd"], 1, cpad)]
        meta.append(dict(shifts=shifts, has_down=has_down))

    weights += [pad2(params["w_feat"][0], cpad, hpad).astype(jnp.bfloat16),
                pad2(params["b_feat"], 1, hpad)]
    # fc_time as a VPU weighted reduce: replicate the (1, T) weight across all
    # lanes -> (T, hpad) f32, and the scalar bias -> (1, hpad) f32.
    T = params["w_time"].shape[1]
    w_time = jnp.broadcast_to(
        params["w_time"].astype(jnp.float32).reshape(T, 1), (T, hpad))
    b_time = jnp.broadcast_to(
        params["b_time"].astype(jnp.float32).reshape(1, 1), (1, hpad))
    weights += [w_time, b_time]
    return weights, meta


# -----------------------------------------------------------------------------
# Encoder forward (single fused pallas_call)
# -----------------------------------------------------------------------------
def encoder_forward(x, params, block_batch=None):
    B, T, Cin = x.shape
    H = params["b_feat"].shape[1]

    weights, meta = _pack_params(params)
    all_shifts = [s for m in meta for s in m["shifts"]]
    PAD = max(all_shifts) if all_shifts else 0
    PADA = max(SUB, -(-PAD // SUB) * SUB)       # sublane-aligned causal prefix
    SEG = PADA + T

    # Batch blocking: aim for >=256 MXU rows per grid step (capped by B).
    if block_batch is None:
        block_batch = max(1, 256 // max(T, 1))
    Bb = max(1, min(B, block_batch))
    nb = -(-B // Bb)
    B_pad = nb * Bb

    xp = jnp.pad(x, ((0, B_pad - B), (0, 0), (0, C_PAD - Cin)))  # lane-dense

    kernel = functools.partial(_encoder_kernel, blocks=meta, n_w=len(weights),
                               T=T, Bb=Bb, PADA=PADA, SEG=SEG)

    in_specs = [pl.BlockSpec((Bb, T, C_PAD), lambda i: (i, 0, 0))]
    for arr in weights:  # full-array weight blocks, DMA'd once (constant index)
        in_specs.append(
            pl.BlockSpec(arr.shape, lambda i, nd=arr.ndim: (0,) * nd))

    out = pl.pallas_call(
        kernel,
        out_shape=jax.ShapeDtypeStruct((B_pad, 2, H_PAD), jnp.float32),
        grid=(nb,),
        in_specs=in_specs,
        out_specs=pl.BlockSpec((Bb, 2, H_PAD), lambda i: (i, 0, 0)),
        scratch_shapes=[pltpu.VMEM((Bb * SEG, C_PAD), jnp.bfloat16),
                        pltpu.VMEM((Bb * SEG, C_PAD), jnp.bfloat16)],
        compiler_params=pltpu.CompilerParams(
            dimension_semantics=("parallel",)),
    )(xp, *weights)

    h = out[:B, 0, :H]    # fc_feature output at the last timestep
    c = out[:B, 1, :H]    # fc_time over the time axis
    return h, c


# -----------------------------------------------------------------------------
# Pure-JAX f32 reference (for correctness check)
# -----------------------------------------------------------------------------
def _ref_causal_conv(x, w, b, dilation):
    K, _, _ = w.shape
    T = x.shape[1]
    out = 0.0
    for k in range(K):
        s = (K - 1 - k) * dilation
        xs = jnp.pad(x, ((0, 0), (s, 0), (0, 0)))[:, :T, :]
        out = out + jnp.einsum("btc,cd->btd", xs, w[k])
    return out + b.reshape(1, 1, -1)


def encoder_reference(x, params):
    out = x
    for blk in params["tcn"]:
        d = blk["dilation"]
        h1 = jax.nn.relu(_ref_causal_conv(out, blk["w1"], blk["b1"], d))
        h2 = jax.nn.relu(_ref_causal_conv(h1, blk["w2"], blk["b2"], d))
        res = out if blk["wd"] is None else _ref_causal_conv(
            out, blk["wd"], blk["bd"], 1)
        out = jax.nn.relu(h2 + res)
    feat = jnp.einsum("btc,ch->bth", out, params["w_feat"][0]) \
        + params["b_feat"].reshape(1, 1, -1)
    h = feat[:, -1, :]
    c = jnp.einsum("bth,t->bh", feat, params["w_time"][0]) \
        + params["b_time"][0, 0]
    return h, c


# -----------------------------------------------------------------------------
# Deterministic parameter construction (shapes match the nn.Module __init__)
# -----------------------------------------------------------------------------
def init_params(key, input_size, seq_len, tcn_num_channels, lstm_num_hidden,
                tcn_kernel_size):
    keys = iter(jax.random.split(key, 64))
    params = {"tcn": []}

    def weight_normed_conv(k, cin, cout, ksz):
        kv, kg, kb = jax.random.split(k, 3)
        v = 0.1 * jax.random.normal(kv, (cout, cin, ksz), jnp.float32)
        g = 1.0 + 0.1 * jax.random.normal(kg, (cout,), jnp.float32)
        norm = jnp.sqrt(jnp.sum(v * v, axis=(1, 2), keepdims=True)) + 1e-12
        w = g[:, None, None] * v / norm              # (Cout, Cin, K) as torch
        b = 0.1 * jax.random.normal(kb, (cout,), jnp.float32)
        return jnp.transpose(w, (2, 1, 0)), b.reshape(1, cout)  # (K,Cin,Cout)

    cin = input_size
    for i, cout in enumerate(tcn_num_channels):
        d = 2 ** i
        w1, b1 = weight_normed_conv(next(keys), cin, cout, tcn_kernel_size)
        w2, b2 = weight_normed_conv(next(keys), cout, cout, tcn_kernel_size)
        if cin != cout:  # downsample 1x1 conv (no weight norm)
            kd, kdb = jax.random.split(next(keys))
            wd = jnp.transpose(
                0.1 * jax.random.normal(kd, (cout, cin, 1), jnp.float32),
                (2, 1, 0))
            bd = (0.1 * jax.random.normal(kdb, (cout,), jnp.float32)
                  ).reshape(1, cout)
        else:
            wd, bd = None, None
        params["tcn"].append(dict(dilation=d, K=tcn_kernel_size,
                                  w1=w1, b1=b1, w2=w2, b2=b2, wd=wd, bd=bd))
        cin = cout

    kf, kfb, kt, ktb = jax.random.split(next(keys), 4)
    w_feat = 0.1 * jax.random.normal(kf, (lstm_num_hidden, cin), jnp.float32)
    params["w_feat"] = jnp.transpose(w_feat)[None]            # (1, C_last, H)
    params["b_feat"] = (0.1 * jax.random.normal(
        kfb, (lstm_num_hidden,), jnp.float32)).reshape(1, lstm_num_hidden)
    params["w_time"] = 0.1 * jax.random.normal(kt, (1, seq_len), jnp.float32)
    params["b_time"] = (0.1 * jax.random.normal(
        ktb, (1,), jnp.float32)).reshape(1, 1)
    return params


# -----------------------------------------------------------------------------
if __name__ == "__main__":
    # Small shapes consistent with the module: x: (batch=2, seq_len=8, input=4)
    batch, seq_len, input_size = 2, 8, 4
    tcn_num_channels = [8, 8]   # level 0: 1x1 downsample; level 1: identity res
    lstm_num_hidden = 32
    tcn_kernel_size = 2

    key = jax.random.PRNGKey(0)
    kx, kp = jax.random.split(key)
    x = jax.random.normal(kx, (batch, seq_len, input_size), jnp.float32)
    params = init_params(kp, input_size, seq_len, tcn_num_channels,
                         lstm_num_hidden, tcn_kernel_size)

    h, c = encoder_forward(x, params)
    h, c = jax.block_until_ready((h, c))

    h_ref, c_ref = encoder_reference(x, params)
    assert h.shape == (batch, lstm_num_hidden)
    assert c.shape == (batch, lstm_num_hidden)
    # bf16 matmul operands / bf16 activation scratch with f32 accumulation
    assert jnp.allclose(h, h_ref, rtol=3e-2, atol=3e-2)
    assert jnp.allclose(c, c_ref, rtol=3e-2, atol=3e-2)

    print("KERNEL_OK")
</pallas_src>

<mosaic_0001>
module attributes {stable_mosaic.version = 11 : i64} {
  func.func @_encoder_kernel(%arg0: i32, %arg1: memref<2x8x128xf32, #tpu.memory_space<vmem>>, %arg2: memref<256x128xbf16, #tpu.memory_space<vmem>>, %arg3: memref<1x128xf32, #tpu.memory_space<vmem>>, %arg4: memref<256x128xbf16, #tpu.memory_space<vmem>>, %arg5: memref<1x128xf32, #tpu.memory_space<vmem>>, %arg6: memref<128x128xbf16, #tpu.memory_space<vmem>>, %arg7: memref<1x128xf32, #tpu.memory_space<vmem>>, %arg8: memref<256x128xbf16, #tpu.memory_space<vmem>>, %arg9: memref<1x128xf32, #tpu.memory_space<vmem>>, %arg10: memref<256x128xbf16, #tpu.memory_space<vmem>>, %arg11: memref<1x128xf32, #tpu.memory_space<vmem>>, %arg12: memref<128x128xbf16, #tpu.memory_space<vmem>>, %arg13: memref<1x128xf32, #tpu.memory_space<vmem>>, %arg14: memref<8x128xf32, #tpu.memory_space<vmem>>, %arg15: memref<1x128xf32, #tpu.memory_space<vmem>>, %arg16: memref<2x2x128xf32, #tpu.memory_space<vmem>>, %arg17: memref<48x128xbf16, #tpu.memory_space<vmem>>, %arg18: memref<48x128xbf16, #tpu.memory_space<vmem>>) attributes {dimension_semantics = [#tpu.dimension_semantics<parallel>], iteration_bounds = array<i64: 1>, scalar_prefetch = 0 : i64, scratch_operands = 2 : i64, tpu.core_type = #tpu.core_type<tc>, window_params = [{transform_indices = @transform_0, window_bounds = array<i64: 2, 8, 128>}, {pipeline_mode = #tpu.pipeline_mode<synchronous>, transform_indices = @transform_1, window_bounds = array<i64: 256, 128>}, {pipeline_mode = #tpu.pipeline_mode<synchronous>, transform_indices = @transform_2, window_bounds = array<i64: 1, 128>}, {pipeline_mode = #tpu.pipeline_mode<synchronous>, transform_indices = @transform_3, window_bounds = array<i64: 256, 128>}, {pipeline_mode = #tpu.pipeline_mode<synchronous>, transform_indices = @transform_4, window_bounds = array<i64: 1, 128>}, {pipeline_mode = #tpu.pipeline_mode<synchronous>, transform_indices = @transform_5, window_bounds = array<i64: 128, 128>}, {pipeline_mode = #tpu.pipeline_mode<synchronous>, transform_indices = @transform_6, window_bounds = array<i64: 1, 128>}, {pipeline_mode = #tpu.pipeline_mode<synchronous>, transform_indices = @transform_7, window_bounds = array<i64: 256, 128>}, {pipeline_mode = #tpu.pipeline_mode<synchronous>, transform_indices = @transform_8, window_bounds = array<i64: 1, 128>}, {pipeline_mode = #tpu.pipeline_mode<synchronous>, transform_indices = @transform_9, window_bounds = array<i64: 256, 128>}, {pipeline_mode = #tpu.pipeline_mode<synchronous>, transform_indices = @transform_10, window_bounds = array<i64: 1, 128>}, {pipeline_mode = #tpu.pipeline_mode<synchronous>, transform_indices = @transform_11, window_bounds = array<i64: 128, 128>}, {pipeline_mode = #tpu.pipeline_mode<synchronous>, transform_indices = @transform_12, window_bounds = array<i64: 1, 128>}, {pipeline_mode = #tpu.pipeline_mode<synchronous>, transform_indices = @transform_13, window_bounds = array<i64: 8, 128>}, {pipeline_mode = #tpu.pipeline_mode<synchronous>, transform_indices = @transform_14, window_bounds = array<i64: 1, 128>}, {transform_indices = @transform_15, window_bounds = array<i64: 2, 2, 128>}]} {
    %cst = arith.constant 0.000000e+00 : bf16
    %0 = vector.broadcast %cst : bf16 to vector<16x128xbf16>
    %c0 = arith.constant 0 : index
    %c0_0 = arith.constant 0 : index
    %1 = vector.load %arg17[%c0, %c0_0] : memref<48x128xbf16, #tpu.memory_space<vmem>>, vector<16x128xbf16>
    tpu.vector_store %arg17[%c0, %c0_0], %0 {strides = array<i32>} : memref<48x128xbf16, #tpu.memory_space<vmem>>, vector<16x128xbf16>,
    %c0_1 = arith.constant 0 : index
    %c0_2 = arith.constant 0 : index
    %2 = vector.load %arg18[%c0_1, %c0_2] : memref<48x128xbf16, #tpu.memory_space<vmem>>, vector<16x128xbf16>
    tpu.vector_store %arg18[%c0_1, %c0_2], %0 {strides = array<i32>} : memref<48x128xbf16, #tpu.memory_space<vmem>>, vector<16x128xbf16>,
    %c24 = arith.constant 24 : index
    %c0_3 = arith.constant 0 : index
    %3 = vector.load %arg17[%c24, %c0_3] : memref<48x128xbf16, #tpu.memory_space<vmem>>, vector<16x128xbf16>
    tpu.vector_store %arg17[%c24, %c0_3], %0 {strides = array<i32>} : memref<48x128xbf16, #tpu.memory_space<vmem>>, vector<16x128xbf16>,
    %c24_4 = arith.constant 24 : index
    %c0_5 = arith.constant 0 : index
    %4 = vector.load %arg18[%c24_4, %c0_5] : memref<48x128xbf16, #tpu.memory_space<vmem>>, vector<16x128xbf16>
    tpu.vector_store %arg18[%c24_4, %c0_5], %0 {strides = array<i32>} : memref<48x128xbf16, #tpu.memory_space<vmem>>, vector<16x128xbf16>,
    %c0_6 = arith.constant 0 : index
    %c0_7 = arith.constant 0 : index
    %c0_8 = arith.constant 0 : index
    %5 = vector.load %arg1[%c0_6, %c0_7, %c0_8] : memref<2x8x128xf32, #tpu.memory_space<vmem>>, vector<1x8x128xf32>
    %6 = vector.shape_cast %5 : vector<1x8x128xf32> to vector<8x128xf32>
    %7 = arith.truncf %6 : vector<8x128xf32> to vector<8x128xbf16>
    %c16 = arith.constant 16 : index
    %c0_9 = arith.constant 0 : index
    %8 = vector.load %arg17[%c16, %c0_9] : memref<48x128xbf16, #tpu.memory_space<vmem>>, vector<8x128xbf16>
    tpu.vector_store %arg17[%c16, %c0_9], %7 {strides = array<i32>} : memref<48x128xbf16, #tpu.memory_space<vmem>>, vector<8x128xbf16>,
    %c1 = arith.constant 1 : index
    %c0_10 = arith.constant 0 : index
    %c0_11 = arith.constant 0 : index
    %9 = vector.load %arg1[%c1, %c0_10, %c0_11] : memref<2x8x128xf32, #tpu.memory_space<vmem>>, vector<1x8x128xf32>
    %10 = vector.shape_cast %9 : vector<1x8x128xf32> to vector<8x128xf32>
    %11 = arith.truncf %10 : vector<8x128xf32> to vector<8x128xbf16>
    %c40 = arith.constant 40 : index
    %c0_12 = arith.constant 0 : index
    %12 = vector.load %arg17[%c40, %c0_12] : memref<48x128xbf16, #tpu.memory_space<vmem>>, vector<8x128xbf16>
    tpu.vector_store %arg17[%c40, %c0_12], %11 {strides = array<i32>} : memref<48x128xbf16, #tpu.memory_space<vmem>>, vector<8x128xbf16>,
    %c15 = arith.constant 15 : index
    %c0_13 = arith.constant 0 : index
    %13 = vector.load %arg17[%c15, %c0_13] : memref<48x128xbf16, #tpu.memory_space<vmem>>, vector<32x128xbf16>
    %c16_14 = arith.constant 16 : index
    %c0_15 = arith.constant 0 : index
    %14 = vector.load %arg17[%c16_14, %c0_15] : memref<48x128xbf16, #tpu.memory_space<vmem>>, vector<32x128xbf16>
    %15 = tpu.concatenate %13, %14 in 1 : vector<32x128xbf16>, vector<32x128xbf16> -> vector<32x256xbf16>
    %c0_16 = arith.constant 0 : index
    %c0_17 = arith.constant 0 : index
    %16 = vector.load %arg2[%c0_16, %c0_17] : memref<256x128xbf16, #tpu.memory_space<vmem>>, vector<256x128xbf16>
    %cst_18 = arith.constant dense<0.000000e+00> : vector<32x128xf32>
    %17 = tpu.matmul %15, %16, %cst_18 {dimension_numbers = #tpu.dot_dimension_numbers<[1], [0], [0], [1], [0, 0, 1, 1], [], []>} : vector<32x256xbf16>, vector<256x128xbf16>, vector<32x128xf32> -> vector<32x128xf32>
    %c0_19 = arith.constant 0 : index
    %c0_20 = arith.constant 0 : index
    %18 = vector.load %arg3[%c0_19, %c0_20] : memref<1x128xf32, #tpu.memory_space<vmem>>, vector<1x128xf32>
    %19 = vector.broadcast %18 : vector<1x128xf32> to vector<32x128xf32>
    %20 = arith.addf %17, %19 : vector<32x128xf32>
    %cst_21 = arith.constant 0.000000e+00 : f32
    %21 = vector.broadcast %cst_21 : f32 to vector<32x128xf32>
    %22 = arith.maximumf %20, %21 : vector<32x128xf32>
    %23 = arith.truncf %22 : vector<32x128xf32> to vector<32x128xbf16>
    %c16_22 = arith.constant 16 : index
    %c0_23 = arith.constant 0 : index
    %24 = vector.load %arg18[%c16_22, %c0_23] : memref<48x128xbf16, #tpu.memory_space<vmem>>, vector<32x128xbf16>
    tpu.vector_store %arg18[%c16_22, %c0_23], %23 {strides = array<i32>} : memref<48x128xbf16, #tpu.memory_space<vmem>>, vector<32x128xbf16>,
    %c24_24 = arith.constant 24 : index
    %c0_25 = arith.constant 0 : index
    %25 = vector.load %arg18[%c24_24, %c0_25] : memref<48x128xbf16, #tpu.memory_space<vmem>>, vector<16x128xbf16>
    tpu.vector_store %arg18[%c24_24, %c0_25], %0 {strides = array<i32>} : memref<48x128xbf16, #tpu.memory_space<vmem>>, vector<16x128xbf16>,
    %c16_26 = arith.constant 16 : index
    %c0_27 = arith.constant 0 : index
    %26 = vector.load %arg17[%c16_26, %c0_27] : memref<48x128xbf16, #tpu.memory_space<vmem>>, vector<32x128xbf16>
    %c0_28 = arith.constant 0 : index
    %c0_29 = arith.constant 0 : index
    %27 = vector.load %arg6[%c0_28, %c0_29] : memref<128x128xbf16, #tpu.memory_space<vmem>>, vector<128x128xbf16>
    %cst_30 = arith.constant dense<0.000000e+00> : vector<32x128xf32>
    %28 = tpu.matmul %26, %27, %cst_30 {dimension_numbers = #tpu.dot_dimension_numbers<[1], [0], [0], [1], [0, 0, 1, 1], [], []>} : vector<32x128xbf16>, vector<128x128xbf16>, vector<32x128xf32> -> vector<32x128xf32>
    %c0_31 = arith.constant 0 : index
    %c0_32 = arith.constant 0 : index
    %29 = vector.load %arg7[%c0_31, %c0_32] : memref<1x128xf32, #tpu.memory_space<vmem>>, vector<1x128xf32>
    %30 = vector.broadcast %29 : vector<1x128xf32> to vector<32x128xf32>
    %31 = arith.addf %28, %30 : vector<32x128xf32>
    %c15_33 = arith.constant 15 : index
    %c0_34 = arith.constant 0 : index
    %32 = vector.load %arg18[%c15_33, %c0_34] : memref<48x128xbf16, #tpu.memory_space<vmem>>, vector<32x128xbf16>
    %33 = tpu.concatenate %32, %23 in 1 : vector<32x128xbf16>, vector<32x128xbf16> -> vector<32x256xbf16>
    %c0_35 = arith.constant 0 : index
    %c0_36 = arith.constant 0 : index
    %34 = vector.load %arg4[%c0_35, %c0_36] : memref<256x128xbf16, #tpu.memory_space<vmem>>, vector<256x128xbf16>
    %cst_37 = arith.constant dense<0.000000e+00> : vector<32x128xf32>
    %35 = tpu.matmul %33, %34, %cst_37 {dimension_numbers = #tpu.dot_dimension_numbers<[1], [0], [0], [1], [0, 0, 1, 1], [], []>} : vector<32x256xbf16>, vector<256x128xbf16>, vector<32x128xf32> -> vector<32x128xf32>
    %c0_38 = arith.constant 0 : index
    %c0_39 = arith.constant 0 : index
    %36 = vector.load %arg5[%c0_38, %c0_39] : memref<1x128xf32, #tpu.memory_space<vmem>>, vector<1x128xf32>
    %37 = vector.broadcast %36 : vector<1x128xf32> to vector<32x128xf32>
    %38 = arith.addf %35, %37 : vector<32x128xf32>
    %cst_40 = arith.constant 0.000000e+00 : f32
    %39 = vector.broadcast %cst_40 : f32 to vector<32x128xf32>
    %40 = arith.maximumf %38, %39 : vector<32x128xf32>
    %41 = arith.addf %40, %31 : vector<32x128xf32>
    %cst_41 = arith.constant 0.000000e+00 : f32
    %42 = vector.broadcast %cst_41 : f32 to vector<32x128xf32>
    %43 = arith.maximumf %41, %42 : vector<32x128xf32>
    %44 = arith.truncf %43 : vector<32x128xf32> to vector<32x128xbf16>
    %c16_42 = arith.constant 16 : index
    %c0_43 = arith.constant 0 : index
    %45 = vector.load %arg17[%c16_42, %c0_43] : memref<48x128xbf16, #tpu.memory_space<vmem>>, vector<32x128xbf16>
    tpu.vector_store %arg17[%c16_42, %c0_43], %44 {strides = array<i32>} : memref<48x128xbf16, #tpu.memory_space<vmem>>, vector<32x128xbf16>,
    %c24_44 = arith.constant 24 : index
    %c0_45 = arith.constant 0 : index
    %46 = vector.load %arg17[%c24_44, %c0_45] : memref<48x128xbf16, #tpu.memory_space<vmem>>, vector<16x128xbf16>
    tpu.vector_store %arg17[%c24_44, %c0_45], %0 {strides = array<i32>} : memref<48x128xbf16, #tpu.memory_space<vmem>>, vector<16x128xbf16>,
    %c14 = arith.constant 14 : index
    %c0_46 = arith.constant 0 : index
    %47 = vector.load %arg17[%c14, %c0_46] : memref<48x128xbf16, #tpu.memory_space<vmem>>, vector<32x128xbf16>
    %c16_47 = arith.constant 16 : index
    %c0_48 = arith.constant 0 : index
    %48 = vector.load %arg17[%c16_47, %c0_48] : memref<48x128xbf16, #tpu.memory_space<vmem>>, vector<32x128xbf16>
    %49 = tpu.concatenate %47, %48 in 1 : vector<32x128xbf16>, vector<32x128xbf16> -> vector<32x256xbf16>
    %c0_49 = arith.constant 0 : index
    %c0_50 = arith.constant 0 : index
    %50 = vector.load %arg8[%c0_49, %c0_50] : memref<256x128xbf16, #tpu.memory_space<vmem>>, vector<256x128xbf16>
    %cst_51 = arith.constant dense<0.000000e+00> : vector<32x128xf32>
    %51 = tpu.matmul %49, %50, %cst_51 {dimension_numbers = #tpu.dot_dimension_numbers<[1], [0], [0], [1], [0, 0, 1, 1], [], []>} : vector<32x256xbf16>, vector<256x128xbf16>, vector<32x128xf32> -> vector<32x128xf32>
    %c0_52 = arith.constant 0 : index
    %c0_53 = arith.constant 0 : index
    %52 = vector.load %arg9[%c0_52, %c0_53] : memref<1x128xf32, #tpu.memory_space<vmem>>, vector<1x128xf32>
    %53 = vector.broadcast %52 : vector<1x128xf32> to vector<32x128xf32>
    %54 = arith.addf %51, %53 : vector<32x128xf32>
    %cst_54 = arith.constant 0.000000e+00 : f32
    %55 = vector.broadcast %cst_54 : f32 to vector<32x128xf32>
    %56 = arith.maximumf %54, %55 : vector<32x128xf32>
    %57 = arith.truncf %56 : vector<32x128xf32> to vector<32x128xbf16>
    %c16_55 = arith.constant 16 : index
    %c0_56 = arith.constant 0 : index
    %58 = vector.load %arg18[%c16_55, %c0_56] : memref<48x128xbf16, #tpu.memory_space<vmem>>, vector<32x128xbf16>
    tpu.vector_store %arg18[%c16_55, %c0_56], %57 {strides = array<i32>} : memref<48x128xbf16, #tpu.memory_space<vmem>>, vector<32x128xbf16>,
    %c24_57 = arith.constant 24 : index
    %c0_58 = arith.constant 0 : index
    %59 = vector.load %arg18[%c24_57, %c0_58] : memref<48x128xbf16, #tpu.memory_space<vmem>>, vector<16x128xbf16>
    tpu.vector_store %arg18[%c24_57, %c0_58], %0 {strides = array<i32>} : memref<48x128xbf16, #tpu.memory_space<vmem>>, vector<16x128xbf16>,
    %c16_59 = arith.constant 16 : index
    %c0_60 = arith.constant 0 : index
    %60 = vector.load %arg17[%c16_59, %c0_60] : memref<48x128xbf16, #tpu.memory_space<vmem>>, vector<32x128xbf16>
    %61 = arith.extf %60 : vector<32x128xbf16> to vector<32x128xf32>
    %c14_61 = arith.constant 14 : index
    %c0_62 = arith.constant 0 : index
    %62 = vector.load %arg18[%c14_61, %c0_62] : memref<48x128xbf16, #tpu.memory_space<vmem>>, vector<32x128xbf16>
    %63 = tpu.concatenate %62, %57 in 1 : vector<32x128xbf16>, vector<32x128xbf16> -> vector<32x256xbf16>
    %c0_63 = arith.constant 0 : index
    %c0_64 = arith.constant 0 : index
    %64 = vector.load %arg10[%c0_63, %c0_64] : memref<256x128xbf16, #tpu.memory_space<vmem>>, vector<256x128xbf16>
    %cst_65 = arith.constant dense<0.000000e+00> : vector<32x128xf32>
    %65 = tpu.matmul %63, %64, %cst_65 {dimension_numbers = #tpu.dot_dimension_numbers<[1], [0], [0], [1], [0, 0, 1, 1], [], []>} : vector<32x256xbf16>, vector<256x128xbf16>, vector<32x128xf32> -> vector<32x128xf32>
    %c0_66 = arith.constant 0 : index
    %c0_67 = arith.constant 0 : index
    %66 = vector.load %arg11[%c0_66, %c0_67] : memref<1x128xf32, #tpu.memory_space<vmem>>, vector<1x128xf32>
    %67 = vector.broadcast %66 : vector<1x128xf32> to vector<32x128xf32>
    %68 = arith.addf %65, %67 : vector<32x128xf32>
    %cst_68 = arith.constant 0.000000e+00 : f32
    %69 = vector.broadcast %cst_68 : f32 to vector<32x128xf32>
    %70 = arith.maximumf %68, %69 : vector<32x128xf32>
    %71 = arith.addf %70, %61 : vector<32x128xf32>
    %cst_69 = arith.constant 0.000000e+00 : f32
    %72 = vector.broadcast %cst_69 : f32 to vector<32x128xf32>
    %73 = arith.maximumf %71, %72 : vector<32x128xf32>
    %74 = arith.truncf %73 : vector<32x128xf32> to vector<32x128xbf16>
    %c16_70 = arith.constant 16 : index
    %c0_71 = arith.constant 0 : index
    %75 = vector.load %arg17[%c16_70, %c0_71] : memref<48x128xbf16, #tpu.memory_space<vmem>>, vector<32x128xbf16>
    tpu.vector_store %arg17[%c16_70, %c0_71], %74 {strides = array<i32>} : memref<48x128xbf16, #tpu.memory_space<vmem>>, vector<32x128xbf16>,
    %c24_72 = arith.constant 24 : index
    %c0_73 = arith.constant 0 : index
    %76 = vector.load %arg17[%c24_72, %c0_73] : memref<48x128xbf16, #tpu.memory_space<vmem>>, vector<16x128xbf16>
    tpu.vector_store %arg17[%c24_72, %c0_73], %0 {strides = array<i32>} : memref<48x128xbf16, #tpu.memory_space<vmem>>, vector<16x128xbf16>,
    %c16_74 = arith.constant 16 : index
    %c0_75 = arith.constant 0 : index
    %77 = vector.load %arg17[%c16_74, %c0_75] : memref<48x128xbf16, #tpu.memory_space<vmem>>, vector<32x128xbf16>
    %c0_76 = arith.constant 0 : index
    %c0_77 = arith.constant 0 : index
    %78 = vector.load %arg12[%c0_76, %c0_77] : memref<128x128xbf16, #tpu.memory_space<vmem>>, vector<128x128xbf16>
    %cst_78 = arith.constant dense<0.000000e+00> : vector<32x128xf32>
    %79 = tpu.matmul %77, %78, %cst_78 {dimension_numbers = #tpu.dot_dimension_numbers<[1], [0], [0], [1], [0, 0, 1, 1], [], []>} : vector<32x128xbf16>, vector<128x128xbf16>, vector<32x128xf32> -> vector<32x128xf32>
    %c0_79 = arith.constant 0 : index
    %c0_80 = arith.constant 0 : index
    %80 = vector.load %arg13[%c0_79, %c0_80] : memref<1x128xf32, #tpu.memory_space<vmem>>, vector<1x128xf32>
    %81 = vector.broadcast %80 : vector<1x128xf32> to vector<32x128xf32>
    %82 = arith.addf %79, %81 : vector<32x128xf32>
    %c0_81 = arith.constant 0 : index
    %c0_82 = arith.constant 0 : index
    %83 = vector.load %arg14[%c0_81, %c0_82] : memref<8x128xf32, #tpu.memory_space<vmem>>, vector<8x128xf32>
    %c0_83 = arith.constant 0 : index
    %c0_84 = arith.constant 0 : index
    %84 = vector.load %arg15[%c0_83, %c0_84] : memref<1x128xf32, #tpu.memory_space<vmem>>, vector<1x128xf32>
    %85 = vector.extract_strided_slice %82 {offsets = [0, 0], sizes = [8, 128], strides = [1, 1]} : vector<32x128xf32> to vector<8x128xf32>
    %86 = vector.extract_strided_slice %85 {offsets = [7, 0], sizes = [1, 128], strides = [1, 1]} : vector<8x128xf32> to vector<1x128xf32>
    %87 = arith.mulf %85, %83 : vector<8x128xf32>
    %cst_85 = arith.constant dense<0.000000e+00> : vector<128xf32>
    %88 = vector.multi_reduction <add>, %87, %cst_85 [0] : vector<8x128xf32> to vector<128xf32>
    %89 = vector.shape_cast %88 : vector<128xf32> to vector<1x128xf32>
    %90 = arith.addf %89, %84 : vector<1x128xf32>
    %91 = vector.shape_cast %86 : vector<1x128xf32> to vector<1x1x128xf32>
    %c0_86 = arith.constant 0 : index
    %c0_87 = arith.constant 0 : index
    %c0_88 = arith.constant 0 : index
    %92 = vector.load %arg16[%c0_86, %c0_87, %c0_88] : memref<2x2x128xf32, #tpu.memory_space<vmem>>, vector<1x1x128xf32>
    tpu.vector_store %arg16[%c0_86, %c0_87, %c0_88], %91 {strides = array<i32>} : memref<2x2x128xf32, #tpu.memory_space<vmem>>, vector<1x1x128xf32>,
    %93 = vector.shape_cast %90 : vector<1x128xf32> to vector<1x1x128xf32>
    %c0_89 = arith.constant 0 : index
    %c1_90 = arith.constant 1 : index
    %c0_91 = arith.constant 0 : index
    %94 = vector.load %arg16[%c0_89, %c1_90, %c0_91] : memref<2x2x128xf32, #tpu.memory_space<vmem>>, vector<1x1x128xf32>
    tpu.vector_store %arg16[%c0_89, %c1_90, %c0_91], %93 {strides = array<i32>} : memref<2x2x128xf32, #tpu.memory_space<vmem>>, vector<1x1x128xf32>,
    %95 = vector.extract_strided_slice %82 {offsets = [24, 0], sizes = [8, 128], strides = [1, 1]} : vector<32x128xf32> to vector<8x128xf32>
    %96 = vector.extract_strided_slice %95 {offsets = [7, 0], sizes = [1, 128], strides = [1, 1]} : vector<8x128xf32> to vector<1x128xf32>
    %97 = arith.mulf %95, %83 : vector<8x128xf32>
    %cst_92 = arith.constant dense<0.000000e+00> : vector<128xf32>
    %98 = vector.multi_reduction <add>, %97, %cst_92 [0] : vector<8x128xf32> to vector<128xf32>
    %99 = vector.shape_cast %98 : vector<128xf32> to vector<1x128xf32>
    %100 = arith.addf %99, %84 : vector<1x128xf32>
    %101 = vector.shape_cast %96 : vector<1x128xf32> to vector<1x1x128xf32>
    %c1_93 = arith.constant 1 : index
    %c0_94 = arith.constant 0 : index
    %c0_95 = arith.constant 0 : index
    %102 = vector.load %arg16[%c1_93, %c0_94, %c0_95] : memref<2x2x128xf32, #tpu.memory_space<vmem>>, vector<1x1x128xf32>
    tpu.vector_store %arg16[%c1_93, %c0_94, %c0_95], %101 {strides = array<i32>} : memref<2x2x128xf32, #tpu.memory_space<vmem>>, vector<1x1x128xf32>,
    %103 = vector.shape_cast %100 : vector<1x128xf32> to vector<1x1x128xf32>
    %c1_96 = arith.constant 1 : index
    %c1_97 = arith.constant 1 : index
    %c0_98 = arith.constant 0 : index
    %104 = vector.load %arg16[%c1_96, %c1_97, %c0_98] : memref<2x2x128xf32, #tpu.memory_space<vmem>>, vector<1x1x128xf32>
    tpu.vector_store %arg16[%c1_96, %c1_97, %c0_98], %103 {strides = array<i32>} : memref<2x2x128xf32, #tpu.memory_space<vmem>>, vector<1x1x128xf32>,
    return
  }
  func.func @transform_0(%arg0: i32) -> (i32, i32, i32) {
    %c0_i32 = arith.constant 0 : i32
    %c0_i32_0 = arith.constant 0 : i32
    %c0_i32_1 = arith.constant 0 : i32
    return %arg0, %c0_i32, %c0_i32_0 : i32, i32, i32
  }
  func.func @transform_1(%arg0: i32) -> (i32, i32) {
    %c0_i32 = arith.constant 0 : i32
    %c0_i32_0 = arith.constant 0 : i32
    %c0_i32_1 = arith.constant 0 : i32
    return %c0_i32, %c0_i32_0 : i32, i32
  }
  func.func @transform_2(%arg0: i32) -> (i32, i32) {
    %c0_i32 = arith.constant 0 : i32
    %c0_i32_0 = arith.constant 0 : i32
    %c0_i32_1 = arith.constant 0 : i32
    return %c0_i32, %c0_i32_0 : i32, i32
  }
  func.func @transform_3(%arg0: i32) -> (i32, i32) {
    %c0_i32 = arith.constant 0 : i32
    %c0_i32_0 = arith.constant 0 : i32
    %c0_i32_1 = arith.constant 0 : i32
    return %c0_i32, %c0_i32_0 : i32, i32
  }
  func.func @transform_4(%arg0: i32) -> (i32, i32) {
    %c0_i32 = arith.constant 0 : i32
    %c0_i32_0 = arith.constant 0 : i32
    %c0_i32_1 = arith.constant 0 : i32
    return %c0_i32, %c0_i32_0 : i32, i32
  }
  func.func @transform_5(%arg0: i32) -> (i32, i32) {
    %c0_i32 = arith.constant 0 : i32
    %c0_i32_0 = arith.constant 0 : i32
    %c0_i32_1 = arith.constant 0 : i32
    return %c0_i32, %c0_i32_0 : i32, i32
  }
  func.func @transform_6(%arg0: i32) -> (i32, i32) {
    %c0_i32 = arith.constant 0 : i32
    %c0_i32_0 = arith.constant 0 : i32
    %c0_i32_1 = arith.constant 0 : i32
    return %c0_i32, %c0_i32_0 : i32, i32
  }
  func.func @transform_7(%arg0: i32) -> (i32, i32) {
    %c0_i32 = arith.constant 0 : i32
    %c0_i32_0 = arith.constant 0 : i32
    %c0_i32_1 = arith.constant 0 : i32
    return %c0_i32, %c0_i32_0 : i32, i32
  }
  func.func @transform_8(%arg0: i32) -> (i32, i32) {
    %c0_i32 = arith.constant 0 : i32
    %c0_i32_0 = arith.constant 0 : i32
    %c0_i32_1 = arith.constant 0 : i32
    return %c0_i32, %c0_i32_0 : i32, i32
  }
  func.func @transform_9(%arg0: i32) -> (i32, i32) {
    %c0_i32 = arith.constant 0 : i32
    %c0_i32_0 = arith.constant 0 : i32
    %c0_i32_1 = arith.constant 0 : i32
    return %c0_i32, %c0_i32_0 : i32, i32
  }
  func.func @transform_10(%arg0: i32) -> (i32, i32) {
    %c0_i32 = arith.constant 0 : i32
    %c0_i32_0 = arith.constant 0 : i32
    %c0_i32_1 = arith.constant 0 : i32
    return %c0_i32, %c0_i32_0 : i32, i32
  }
  func.func @transform_11(%arg0: i32) -> (i32, i32) {
    %c0_i32 = arith.constant 0 : i32
    %c0_i32_0 = arith.constant 0 : i32
    %c0_i32_1 = arith.constant 0 : i32
    return %c0_i32, %c0_i32_0 : i32, i32
  }
  func.func @transform_12(%arg0: i32) -> (i32, i32) {
    %c0_i32 = arith.constant 0 : i32
    %c0_i32_0 = arith.constant 0 : i32
    %c0_i32_1 = arith.constant 0 : i32
    return %c0_i32, %c0_i32_0 : i32, i32
  }
  func.func @transform_13(%arg0: i32) -> (i32, i32) {
    %c0_i32 = arith.constant 0 : i32
    %c0_i32_0 = arith.constant 0 : i32
    %c0_i32_1 = arith.constant 0 : i32
    return %c0_i32, %c0_i32_0 : i32, i32
  }
  func.func @transform_14(%arg0: i32) -> (i32, i32) {
    %c0_i32 = arith.constant 0 : i32
    %c0_i32_0 = arith.constant 0 : i32
    %c0_i32_1 = arith.constant 0 : i32
    return %c0_i32, %c0_i32_0 : i32, i32
  }
  func.func @transform_15(%arg0: i32) -> (i32, i32, i32) {
    %c0_i32 = arith.constant 0 : i32
    %c0_i32_0 = arith.constant 0 : i32
    %c0_i32_1 = arith.constant 0 : i32
    return %arg0, %c0_i32, %c0_i32_0 : i32, i32, i32
  }
}

</mosaic_0001>

<llo_original>
// kernel: tpu_custom_call.1
$region0: #{tpu_custom_call.1}
  #allocation0 [shape = 'u32[]', space=smem, size = 0x4, offset = 0x4, fixed_abs, tag = 'smem constant byte address 0x4 - core index']
  #allocation1 [shape = 'u32[144,128]{1,0:T(1,128)}', space=vmem, size = 0x12000, scoped, tag = 'internal scratch']
  #allocation2 [shape = 'bf16[48,128]{1,0:T(16,128)(2,1)}', space=vmem, size = 0x3000, scoped, tag = 'scratch operand']
  #allocation3 [shape = 'bf16[48,128]{1,0:T(16,128)(2,1)}', space=vmem, size = 0x3000, scoped, tag = 'scratch operand']
  %s0 = inlined_call_operand.hbm [shape: f32[2,8,128], index: 0, kind: input, shape index: {}]
  %s1 = inlined_call_operand.hbm [shape: bf16[256,128], index: 1, kind: input, shape index: {}]
  %s2 = inlined_call_operand.vmem [shape: f32[1,128], index: 2, kind: input, shape index: {}]
  %s3 = inlined_call_operand.hbm [shape: bf16[256,128], index: 3, kind: input, shape index: {}]
  %s4 = inlined_call_operand.vmem [shape: f32[1,128], index: 4, kind: input, shape index: {}]
  %s5 = inlined_call_operand.hbm [shape: bf16[128,128], index: 5, kind: input, shape index: {}]
  %s6 = inlined_call_operand.vmem [shape: f32[1,128], index: 6, kind: input, shape index: {}]
  %s7 = inlined_call_operand.hbm [shape: bf16[256,128], index: 7, kind: input, shape index: {}]
  %s8 = inlined_call_operand.vmem [shape: f32[1,128], index: 8, kind: input, shape index: {}]
  %s9 = inlined_call_operand.hbm [shape: bf16[256,128], index: 9, kind: input, shape index: {}]
  %s10 = inlined_call_operand.vmem [shape: f32[1,128], index: 10, kind: input, shape index: {}]
  %s11 = inlined_call_operand.hbm [shape: bf16[128,128], index: 11, kind: input, shape index: {}]
  %s12 = inlined_call_operand.vmem [shape: f32[1,128], index: 12, kind: input, shape index: {}]
  %s13 = inlined_call_operand.vmem [shape: f32[8,128], index: 13, kind: input, shape index: {}]
  %s14 = inlined_call_operand.vmem [shape: f32[1,128], index: 14, kind: input, shape index: {}]
  %s15 = inlined_call_operand.hbm [shape: f32[2,2,128], index: 15, kind: output, shape index: {}]
  %s16 = sld [smem:[#allocation0]]
  $region98: #{tpu_custom_call.1} parent=0
    _
  %s18 = ssub.s32 1, %s16
  %s19 = scalar_select 0, %s18, %s16
  $region1: #{tpu_custom_call.1} parent=0
    #allocation4 [shape = 'u8[8192]{0}', space=vmem, size = 0x2000, scoped, tag = 'input window, operand 0, single buffered']
    #allocation5 [shape = 's32[1]{0}', space=sflag, size = 0x4, scoped, tag = 'scoped memory for tpu_custom_call.1']
    #allocation6 [shape = 's32[1]{0}', space=sflag, size = 0x4, scoped, tag = 'scoped memory for tpu_custom_call.1']
    #allocation7 [shape = 'u8[65536]{0}', space=vmem, size = 0x10000, scoped, tag = 'input window, operand 1, single buffered']
    #allocation8 [shape = 's32[1]{0}', space=sflag, size = 0x4, scoped, tag = 'scoped memory for tpu_custom_call.1']
    #allocation9 [shape = 'u8[65536]{0}', space=vmem, size = 0x10000, scoped, tag = 'input window, operand 3, single buffered']
    #allocation10 [shape = 'u8[32768]{0}', space=vmem, size = 0x8000, scoped, tag = 'input window, operand 5, single buffered']
    #allocation11 [shape = 's32[1]{0}', space=sflag, size = 0x4, scoped, tag = 'scoped memory for tpu_custom_call.1']
    #allocation12 [shape = 'u8[65536]{0}', space=vmem, size = 0x10000, scoped, tag = 'input window, operand 7, single buffered']
    #allocation13 [shape = 'u8[65536]{0}', space=vmem, size = 0x10000, scoped, tag = 'input window, operand 9, single buffered']
    #allocation14 [shape = 's32[1]{0}', space=sflag, size = 0x4, scoped, tag = 'scoped memory for tpu_custom_call.1']
    #allocation15 [shape = 'u8[32768]{0}', space=vmem, size = 0x8000, scoped, tag = 'input window, operand 11, single buffered']
    #allocation16 [shape = 'u8[2048]{0}', space=vmem, size = 0x800, scoped, tag = 'output window, operand 0, single buffered']
    %20 = vsyncpa [#allocation5], 0
    %21 = vsyncpa [#allocation8], 0
    %22 = vsyncpa [#allocation11], 0
    %23 = vsyncpa [#allocation14], 0
    %24 = vsyncpa [#allocation6], 0
    // Predicated region
    $region2: #{tpu_custom_call.1} parent=1 // pred_check
      _
    $region3: #{tpu_custom_call.1} parent=1 // pred_check_branch
      %26 = sbr.rel (0) target = $region5
    $region4: #{tpu_custom_call.1} parent=1 // pred_region
      %s28 = ssub.s32 256, 256
      %29 = vsyncadd [#allocation5], %s28
      %s30 = sshll.u32 [#allocation4], 4
      %s31 = int_to_ptr.vmem [resolvable:$true] %s30
      %36 = dma.hbm_to_vmem [thread:$0]  %s0, 256, %s31, [#allocation5], 128, 128, 8
    $region5: #{tpu_custom_call.1} parent=1 // pred_fallthru
      _
    // Predicated region
    $region6: #{tpu_custom_call.1} parent=1 // pred_check
      _
    $region7: #{tpu_custom_call.1} parent=1 // pred_check_branch
      %38 = sbr.rel (0) target = $region9
    $region8: #{tpu_custom_call.1} parent=1 // pred_region
      %s40 = ssub.s32 2048, 2048
      %41 = vsyncadd [#allocation8], %s40
      %s42 = sshll.u32 [#allocation7], 4
      %s43 = int_to_ptr.vmem [resolvable:$true] %s42
      %48 = dma.hbm_to_vmem [thread:$0]  %s1, 2048, %s43, [#allocation8], 64, 64, 4
    $region9: #{tpu_custom_call.1} parent=1 // pred_fallthru
      _
    // Predicated region
    $region10: #{tpu_custom_call.1} parent=1 // pred_check
      _
    $region11: #{tpu_custom_call.1} parent=1 // pred_check_branch
      %50 = sbr.rel (0) target = $region13
    $region12: #{tpu_custom_call.1} parent=1 // pred_region
      _
    $region13: #{tpu_custom_call.1} parent=1 // pred_fallthru
      _
    // Predicated region
    $region14: #{tpu_custom_call.1} parent=1 // pred_check
      _
    $region15: #{tpu_custom_call.1} parent=1 // pred_check_branch
      %52 = sbr.rel (0) target = $region17
    $region16: #{tpu_custom_call.1} parent=1 // pred_region
      %s54 = ssub.s32 2048, 2048
      %55 = vsyncadd [#allocation8], %s54
      %s56 = sshll.u32 [#allocation9], 4
      %s57 = int_to_ptr.vmem [resolvable:$true] %s56
      %62 = dma.hbm_to_vmem [thread:$0]  %s3, 2048, %s57, [#allocation8], 64, 64, 4
    $region17: #{tpu_custom_call.1} parent=1 // pred_fallthru
      _
    // Predicated region
    $region18: #{tpu_custom_call.1} parent=1 // pred_check
      _
    $region19: #{tpu_custom_call.1} parent=1 // pred_check_branch
      %64 = sbr.rel (0) target = $region21
    $region20: #{tpu_custom_call.1} parent=1 // pred_region
      _
    $region21: #{tpu_custom_call.1} parent=1 // pred_fallthru
      _
    // Predicated region
    $region22: #{tpu_custom_call.1} parent=1 // pred_check
      _
    $region23: #{tpu_custom_call.1} parent=1 // pred_check_branch
      %66 = sbr.rel (0) target = $region25
    $region24: #{tpu_custom_call.1} parent=1 // pred_region
      %s68 = ssub.s32 1024, 1024
      %69 = vsyncadd [#allocation11], %s68
      %s70 = sshll.u32 [#allocation10], 4
      %s71 = int_to_ptr.vmem [resolvable:$true] %s70
      %76 = dma.hbm_to_vmem [thread:$0]  %s5, 1024, %s71, [#allocation11], 64, 64, 4
    $region25: #{tpu_custom_call.1} parent=1 // pred_fallthru
      _
    // Predicated region
    $region26: #{tpu_custom_call.1} parent=1 // pred_check
      _
    $region27: #{tpu_custom_call.1} parent=1 // pred_check_branch
      %78 = sbr.rel (0) target = $region29
    $region28: #{tpu_custom_call.1} parent=1 // pred_region
      _
    $region29: #{tpu_custom_call.1} parent=1 // pred_fallthru
      _
    // Predicated region
    $region30: #{tpu_custom_call.1} parent=1 // pred_check
      _
    $region31: #{tpu_custom_call.1} parent=1 // pred_check_branch
      %80 = sbr.rel (0) target = $region33
    $region32: #{tpu_custom_call.1} parent=1 // pred_region
      %s82 = ssub.s32 2048, 2048
      %83 = vsyncadd [#allocation11], %s82
      %s84 = sshll.u32 [#allocation12], 4
      %s85 = int_to_ptr.vmem [resolvable:$true] %s84
      %90 = dma.hbm_to_vmem [thread:$0]  %s7, 2048, %s85, [#allocation11], 64, 64, 4
    $region33: #{tpu_custom_call.1} parent=1 // pred_fallthru
      _
    // Predicated region
    $region34: #{tpu_custom_call.1} parent=1 // pred_check
      _
    $region35: #{tpu_custom_call.1} parent=1 // pred_check_branch
      %92 = sbr.rel (0) target = $region37
    $region36: #{tpu_custom_call.1} parent=1 // pred_region
      _
    $region37: #{tpu_custom_call.1} parent=1 // pred_fallthru
      _
    // Predicated region
    $region38: #{tpu_custom_call.1} parent=1 // pred_check
      _
    $region39: #{tpu_custom_call.1} parent=1 // pred_check_branch
      %94 = sbr.rel (0) target = $region41
    $region40: #{tpu_custom_call.1} parent=1 // pred_region
      %s96 = ssub.s32 2048, 2048
      %97 = vsyncadd [#allocation14], %s96
      %s98 = sshll.u32 [#allocation13], 4
      %s99 = int_to_ptr.vmem [resolvable:$true] %s98
      %104 = dma.hbm_to_vmem [thread:$0]  %s9, 2048, %s99, [#allocation14], 64, 64, 4
    $region41: #{tpu_custom_call.1} parent=1 // pred_fallthru
      _
    // Predicated region
    $region42: #{tpu_custom_call.1} parent=1 // pred_check
      _
    $region43: #{tpu_custom_call.1} parent=1 // pred_check_branch
      %106 = sbr.rel (0) target = $region45
    $region44: #{tpu_custom_call.1} parent=1 // pred_region
      _
    $region45: #{tpu_custom_call.1} parent=1 // pred_fallthru
      _
    // Predicated region
    $region46: #{tpu_custom_call.1} parent=1 // pred_check
      _
    $region47: #{tpu_custom_call.1} parent=1 // pred_check_branch
      %108 = sbr.rel (0) target = $region49
    $region48: #{tpu_custom_call.1} parent=1 // pred_region
      %s110 = ssub.s32 1024, 1024
      %111 = vsyncadd [#allocation14], %s110
      %s112 = sshll.u32 [#allocation15], 4
      %s113 = int_to_ptr.vmem [resolvable:$true] %s112
      %118 = dma.hbm_to_vmem [thread:$0]  %s11, 1024, %s113, [#allocation14], 64, 64, 4
    $region49: #{tpu_custom_call.1} parent=1 // pred_fallthru
      _
    // Predicated region
    $region50: #{tpu_custom_call.1} parent=1 // pred_check
      _
    $region51: #{tpu_custom_call.1} parent=1 // pred_check_branch
      %120 = sbr.rel (0) target = $region53
    $region52: #{tpu_custom_call.1} parent=1 // pred_region
      _
    $region53: #{tpu_custom_call.1} parent=1 // pred_fallthru
      _
    // Predicated region
    $region54: #{tpu_custom_call.1} parent=1 // pred_check
      _
    $region55: #{tpu_custom_call.1} parent=1 // pred_check_branch
      %122 = sbr.rel (0) target = $region57
    $region56: #{tpu_custom_call.1} parent=1 // pred_region
      _
    $region57: #{tpu_custom_call.1} parent=1 // pred_fallthru
      _
    // Predicated region
    $region58: #{tpu_custom_call.1} parent=1 // pred_check
      _
    $region59: #{tpu_custom_call.1} parent=1 // pred_check_branch
      %124 = sbr.rel (0) target = $region61
    $region60: #{tpu_custom_call.1} parent=1 // pred_region
      _
    $region61: #{tpu_custom_call.1} parent=1 // pred_fallthru
      _
    // Predicated region
    $region62: #{tpu_custom_call.1} parent=1 // pred_check
      _
    $region63: #{tpu_custom_call.1} parent=1 // pred_check_branch
      %126 = sbr.rel (0) target = $region65
    $region64: #{tpu_custom_call.1} parent=1 // pred_region
      %127 = dma.done [#allocation5], 256
    $region65: #{tpu_custom_call.1} parent=1 // pred_fallthru
      _
    // Predicated region
    $region66: #{tpu_custom_call.1} parent=1 // pred_check
      _
    $region67: #{tpu_custom_call.1} parent=1 // pred_check_branch
      %129 = sbr.rel (0) target = $region69
    $region68: #{tpu_custom_call.1} parent=1 // pred_region
      %130 = dma.done [#allocation8], 2048
    $region69: #{tpu_custom_call.1} parent=1 // pred_fallthru
      _
    // Predicated region
    $region70: #{tpu_custom_call.1} parent=1 // pred_check
      _
    $region71: #{tpu_custom_call.1} parent=1 // pred_check_branch
      %132 = sbr.rel (0) target = $region73
    $region72: #{tpu_custom_call.1} parent=1 // pred_region
      %133 = dma.done [#allocation8], 2048
    $region73: #{tpu_custom_call.1} parent=1 // pred_fallthru
      _
    // Predicated region
    $region74: #{tpu_custom_call.1} parent=1 // pred_check
      _
    $region75: #{tpu_custom_call.1} parent=1 // pred_check_branch
      %135 = sbr.rel (0) target = $region77
    $region76: #{tpu_custom_call.1} parent=1 // pred_region
      %136 = dma.done [#allocation11], 1024
    $region77: #{tpu_custom_call.1} parent=1 // pred_fallthru
      _
    // Predicated region
    $region78: #{tpu_custom_call.1} parent=1 // pred_check
      _
    $region79: #{tpu_custom_call.1} parent=1 // pred_check_branch
      %138 = sbr.rel (0) target = $region81
    $region80: #{tpu_custom_call.1} parent=1 // pred_region
      %139 = dma.done [#allocation11], 2048
    $region81: #{tpu_custom_call.1} parent=1 // pred_fallthru
      _
    // Predicated region
    $region82: #{tpu_custom_call.1} parent=1 // pred_check
      _
    $region83: #{tpu_custom_call.1} parent=1 // pred_check_branch
      %141 = sbr.rel (0) target = $region85
    $region84: #{tpu_custom_call.1} parent=1 // pred_region
      %142 = dma.done [#allocation14], 2048
    $region85: #{tpu_custom_call.1} parent=1 // pred_fallthru
      _
    // Predicated region
    $region86: #{tpu_custom_call.1} parent=1 // pred_check
      _
    $region87: #{tpu_custom_call.1} parent=1 // pred_check_branch
      %144 = sbr.rel (0) target = $region89
    $region88: #{tpu_custom_call.1} parent=1 // pred_region
      %145 = dma.done [#allocation14], 1024
    $region89: #{tpu_custom_call.1} parent=1 // pred_fallthru
      _
    %147 = vst [vmem:[#allocation2] sm:$0xff] 0
    %148 = vst [vmem:[#allocation3] sm:$0xff] 0
    %149 = vst [vmem:[#allocation2 + $0x8] sm:$0xf0] 0
    %150 = vst [vmem:[#allocation2 + $0x10] sm:$0xf] 0
    %151 = vst [vmem:[#allocation3 + $0x8] sm:$0xf0] 0
    %152 = vst [vmem:[#allocation3 + $0x10] sm:$0xf] 0
    %v153 = vld [vmem:[#allocation4] sm:$0xff]
    %v154 = vpack.c.bf16 %v153, %v153
    %155 = vst [vmem:[#allocation2 + $0x8] sm:$0xf] %v154
    %s156 = scalar_lea.vmem [#allocation4], 8
    %v157 = vld [vmem:[%s156] sm:$0xff]
    %v158 = vpack.c.bf16 %v157, %v157
    %v160 = vrot.slane %v158, 4
    %162 = vst [vmem:[#allocation2 + $0x10] sm:$0xf0] %v160
    %v163 = vld [vmem:[#allocation2] sm:$0x80]
    %v164 = vld [vmem:[#allocation2 + $0x8] sm:$0xff]
    %v165 = vld [vmem:[#allocation2 + $0x10] sm:$0xff]
    %vm166 = vsmask.f32 7424
    %v168 = vshll.u32 %v164, 16
    %v170 = vrot.slane %v168, 1
    %v171 = vshrl.u32 %v164, 16
    %v173 = vor.u32 %v171, %v170
    %v175 = vshll.u32 %v165, 16
    %v177 = vrot.slane %v175, 1
    %v178 = vsel %vm166, %v173, %v177
    %v179 = vshrl.u32 %v165, 16
    %v181 = vor.u32 %v179, %v177
    %v182 = vld [vmem:[#allocation7] sm:$0xf]
    %v183 = vld [vmem:[#allocation7 + $0x4] sm:$0xf]
    %v184 = vld [vmem:[#allocation7 + $0x8] sm:$0xf]
    %v185 = vld [vmem:[#allocation7 + $0xc] sm:$0xf]
    %v186 = vld [vmem:[#allocation7 + $0x10] sm:$0xf]
    %v187 = vld [vmem:[#allocation7 + $0x14] sm:$0xf]
    %v188 = vld [vmem:[#allocation7 + $0x18] sm:$0xf]
    %v189 = vld [vmem:[#allocation7 + $0x1c] sm:$0xf]
    %v190 = vld [vmem:[#allocation7 + $0x20] sm:$0xf]
    %v191 = vld [vmem:[#allocation7 + $0x24] sm:$0xf]
    %v192 = vld [vmem:[#allocation7 + $0x28] sm:$0xf]
    %v193 = vld [vmem:[#allocation7 + $0x2c] sm:$0xf]
    %v194 = vld [vmem:[#allocation7 + $0x30] sm:$0xf]
    %v195 = vld [vmem:[#allocation7 + $0x34] sm:$0xf]
    %v196 = vld [vmem:[#allocation7 + $0x38] sm:$0xf]
    %v197 = vld [vmem:[#allocation7 + $0x3c] sm:$0xf]
    %v198 = vld [vmem:[#allocation7 + $0x40] sm:$0xf]
    %v199 = vld [vmem:[#allocation7 + $0x44] sm:$0xf]
    %v200 = vld [vmem:[#allocation7 + $0x48] sm:$0xf]
    %v201 = vld [vmem:[#allocation7 + $0x4c] sm:$0xf]
    %v202 = vld [vmem:[#allocation7 + $0x50] sm:$0xf]
    %v203 = vld [vmem:[#allocation7 + $0x54] sm:$0xf]
    %v204 = vld [vmem:[#allocation7 + $0x58] sm:$0xf]
    %v205 = vld [vmem:[#allocation7 + $0x5c] sm:$0xf]
    %v206 = vld [vmem:[#allocation7 + $0x60] sm:$0xf]
    %v207 = vld [vmem:[#allocation7 + $0x64] sm:$0xf]
    %v208 = vld [vmem:[#allocation7 + $0x68] sm:$0xf]
    %v209 = vld [vmem:[#allocation7 + $0x6c] sm:$0xf]
    %v210 = vld [vmem:[#allocation7 + $0x70] sm:$0xf]
    %v211 = vld [vmem:[#allocation7 + $0x74] sm:$0xf]
    %v212 = vld [vmem:[#allocation7 + $0x78] sm:$0xf]
    %v213 = vld [vmem:[#allocation7 + $0x7c] sm:$0xf]
    %v214 = vld [vmem:[%s2] sm:$0x1]
    %v216 = vlaneseq
    %v217 = vshrl.u32 %v216, 7
    %v218 = vsub.s32 0, %v217
    %v219 = vrot.slane %v214, %v218
    %vm221 = vsmask.f32 256
    %v223 = vshrl.u32 %v163, 16
    %v225 = vrot.slane %v223, 7
    %v226 = vrot.slane %v171, 7
    %v227 = vor.u32 %v226, %v168
    %v228 = vsel %vm221, %v225, %v227
    %v230 = vshrl.u32 %v170, 16
    %v232 = vrot.slane %v230, 7
    %v234 = vshrl.u32 %v178, 16
    %v236 = vrot.slane %v234, 7
    %v237 = vshll.u32 %v178, 16
    %v239 = vor.u32 %v236, %v237
    %v240 = vsel %vm221, %v232, %v239
    %v241 = vrot.slane %v179, 7
    %v242 = vor.u32 %v241, %v175
    %v243 = vsel %vm221, %v226, %v242
    %v245 = vshrl.u32 %v181, 16
    %v247 = vrot.slane %v245, 7
    %v248 = vshll.u32 %v181, 16
    %v250 = vor.u32 %v247, %v248
    %v251 = vsel %vm221, %v236, %v250
    %v288 = vunpack.c.l.b16 %v182
    %v289 = vunpack.c.l.b16 %v183
    %v290 = vunpack.c.l.b16 %v184
    %v291 = vunpack.c.l.b16 %v185
    %v292 = vunpack.c.l.b16 %v186
    %v293 = vunpack.c.l.b16 %v187
    %v294 = vunpack.c.l.b16 %v188
    %v295 = vunpack.c.l.b16 %v189
    %v296 = vunpack.c.l.b16 %v190
    %v297 = vunpack.c.l.b16 %v191
    %v298 = vunpack.c.l.b16 %v192
    %v299 = vunpack.c.l.b16 %v193
    %v300 = vunpack.c.l.b16 %v194
    %v301 = vunpack.c.l.b16 %v195
    %v302 = vunpack.c.l.b16 %v196
    %v303 = vunpack.c.l.b16 %v197
    %v304 = vunpack.c.l.b16 %v198
    %v305 = vunpack.c.l.b16 %v199
    %v306 = vunpack.c.l.b16 %v200
    %v307 = vunpack.c.l.b16 %v201
    %v308 = vunpack.c.l.b16 %v202
    %v309 = vunpack.c.l.b16 %v203
    %v310 = vunpack.c.l.b16 %v204
    %v311 = vunpack.c.l.b16 %v205
    %v312 = vunpack.c.l.b16 %v206
    %v313 = vunpack.c.l.b16 %v207
    %v314 = vunpack.c.l.b16 %v208
    %v315 = vunpack.c.l.b16 %v209
    %v316 = vunpack.c.l.b16 %v210
    %v317 = vunpack.c.l.b16 %v211
    %v318 = vunpack.c.l.b16 %v212
    %v319 = vunpack.c.l.b16 %v213
    %v320 = vpack.c.b16 %v289, %v288
    %v321 = vpack.c.b16 %v291, %v290
    %v322 = vpack.c.b16 %v293, %v292
    %v323 = vpack.c.b16 %v295, %v294
    %v324 = vpack.c.b16 %v297, %v296
    %v325 = vpack.c.b16 %v299, %v298
    %v326 = vpack.c.b16 %v301, %v300
    %v327 = vpack.c.b16 %v303, %v302
    %v328 = vpack.c.b16 %v305, %v304
    %v329 = vpack.c.b16 %v307, %v306
    %v330 = vpack.c.b16 %v309, %v308
    %v331 = vpack.c.b16 %v311, %v310
    %v332 = vpack.c.b16 %v313, %v312
    %v333 = vpack.c.b16 %v315, %v314
    %v334 = vpack.c.b16 %v317, %v316
    %v335 = vpack.c.b16 %v319, %v318
    %352 = vmatprep.subr.bf16.mxu0 0
    %353 = vmatpush1.bf16.msra.mxu0 %v320
    %354 = vmatprep.subr.bf16.mxu0 0
    %355 = vmatpush1.bf16.msra.mxu0 %v321
    %356 = vmatprep.subr.bf16.mxu0 0
    %357 = vmatpush1.bf16.msra.mxu0 %v322
    %358 = vmatprep.subr.bf16.mxu0 0
    %359 = vmatpush1.bf16.msra.mxu0 %v323
    %360 = vmatprep.subr.bf16.mxu0 0
    %361 = vmatpush1.bf16.msra.mxu0 %v324
    %362 = vmatprep.subr.bf16.mxu0 0
    %363 = vmatpush1.bf16.msra.mxu0 %v325
    %364 = vmatprep.subr.bf16.mxu0 0
    %365 = vmatpush1.bf16.msra.mxu0 %v326
    %366 = vmatprep.subr.bf16.mxu0 0
    %367 = vmatpush1.bf16.msra.mxu0 %v327
    %368 = vmatprep.subr.bf16.mxu0 0
    %369 = vmatpush1.bf16.msra.mxu0 %v328
    %370 = vmatprep.subr.bf16.mxu0 0
    %371 = vmatpush1.bf16.msra.mxu0 %v329
    %372 = vmatprep.subr.bf16.mxu0 0
    %373 = vmatpush1.bf16.msra.mxu0 %v330
    %374 = vmatprep.subr.bf16.mxu0 0
    %375 = vmatpush1.bf16.msra.mxu0 %v331
    %376 = vmatprep.subr.bf16.mxu0 0
    %377 = vmatpush1.bf16.msra.mxu0 %v332
    %378 = vmatprep.subr.bf16.mxu0 0
    %379 = vmatpush1.bf16.msra.mxu0 %v333
    %380 = vmatprep.subr.bf16.mxu0 0
    %381 = vmatpush1.bf16.msra.mxu0 %v334
    %382 = vmatprep.subr.bf16.mxu0 0
    %383 = vmatpush1.bf16.msra.mxu0 %v335
    %384 = vmatprep.mubr.bf16.mxu0 %v240
    %385 = vmatmul.mubr.bf16.gmra.mrb[0].mxu0 %v228
    %v386 = vpop.f32.mrb[0].mxu0
    %v387 = vadd.f32 %v219, %v386
    %v388 = vpop.f32.mrb[0].mxu0
    %v389 = vpop.f32.mrb[0].mxu0
    %v390 = vadd.f32 %v219, %v389
    %v391 = vpop.f32.mrb[0].mxu0
    %392 = vmatprep.mubr.bf16.mxu0 %v251
    %393 = vmatmul.mubr.bf16.gmra.mrb[0].mxu0 %v243
    %v394 = vpop.f32.mrb[0].mxu0
    %v395 = vadd.f32 %v219, %v394
    %v396 = vpop.f32.mrb[0].mxu0
    %v397 = vpop.f32.mrb[0].mxu0
    %v398 = vadd.f32 %v219, %v397
    %v399 = vpop.f32.mrb[0].mxu0
    %400 = vdwg.mxu0
    %v401 = vmax.f32 %v387, 0.0
    %v402 = vmax.f32 %v390, 0.0
    %v403 = vmax.f32 %v395, 0.0
    %v404 = vmax.f32 %v398, 0.0
    %v405 = vpack.c.bf16 %v402, %v401
    %v406 = vpack.c.bf16 %v404, %v403
    %407 = vst [vmem:[#allocation3 + $0x8] sm:$0xff] %v405
    %408 = vst [vmem:[#allocation3 + $0x10] sm:$0xff] %v406
    %409 = vst [vmem:[#allocation3 + $0x8] sm:$0xf0] 0
    %410 = vst [vmem:[#allocation3 + $0x10] sm:$0xf] 0
    %v411 = vld [vmem:[#allocation2 + $0x8] sm:$0xff]
    %v412 = vld [vmem:[#allocation2 + $0x10] sm:$0xff]
    %v413 = vld [vmem:[#allocation10] sm:$0xf]
    %v414 = vld [vmem:[#allocation10 + $0x4] sm:$0xf]
    %v415 = vld [vmem:[#allocation10 + $0x8] sm:$0xf]
    %v416 = vld [vmem:[#allocation10 + $0xc] sm:$0xf]
    %v417 = vld [vmem:[#allocation10 + $0x10] sm:$0xf]
    %v418 = vld [vmem:[#allocation10 + $0x14] sm:$0xf]
    %v419 = vld [vmem:[#allocation10 + $0x18] sm:$0xf]
    %v420 = vld [vmem:[#allocation10 + $0x1c] sm:$0xf]
    %v421 = vld [vmem:[#allocation10 + $0x20] sm:$0xf]
    %v422 = vld [vmem:[#allocation10 + $0x24] sm:$0xf]
    %v423 = vld [vmem:[#allocation10 + $0x28] sm:$0xf]
    %v424 = vld [vmem:[#allocation10 + $0x2c] sm:$0xf]
    %v425 = vld [vmem:[#allocation10 + $0x30] sm:$0xf]
    %v426 = vld [vmem:[#allocation10 + $0x34] sm:$0xf]
    %v427 = vld [vmem:[#allocation10 + $0x38] sm:$0xf]
    %v428 = vld [vmem:[#allocation10 + $0x3c] sm:$0xf]
    %v429 = vld [vmem:[%s6] sm:$0x1]
    %v431 = vlaneseq
    %v432 = vshrl.u32 %v431, 7
    %v433 = vsub.s32 0, %v432
    %v434 = vrot.slane %v429, %v433
    %v452 = vunpack.c.l.b16 %v413
    %v453 = vunpack.c.l.b16 %v414
    %v454 = vunpack.c.l.b16 %v415
    %v455 = vunpack.c.l.b16 %v416
    %v456 = vunpack.c.l.b16 %v417
    %v457 = vunpack.c.l.b16 %v418
    %v458 = vunpack.c.l.b16 %v419
    %v459 = vunpack.c.l.b16 %v420
    %v460 = vunpack.c.l.b16 %v421
    %v461 = vunpack.c.l.b16 %v422
    %v462 = vunpack.c.l.b16 %v423
    %v463 = vunpack.c.l.b16 %v424
    %v464 = vunpack.c.l.b16 %v425
    %v465 = vunpack.c.l.b16 %v426
    %v466 = vunpack.c.l.b16 %v427
    %v467 = vunpack.c.l.b16 %v428
    %v468 = vpack.c.b16 %v453, %v452
    %v469 = vpack.c.b16 %v455, %v454
    %v470 = vpack.c.b16 %v457, %v456
    %v471 = vpack.c.b16 %v459, %v458
    %v472 = vpack.c.b16 %v461, %v460
    %v473 = vpack.c.b16 %v463, %v462
    %v474 = vpack.c.b16 %v465, %v464
    %v475 = vpack.c.b16 %v467, %v466
    %484 = vmatprep.subr.bf16.mxu0 0
    %485 = vmatpush1.bf16.msra.mxu0 %v468
    %486 = vmatprep.subr.bf16.mxu0 0
    %487 = vmatpush1.bf16.msra.mxu0 %v469
    %488 = vmatprep.subr.bf16.mxu0 0
    %489 = vmatpush1.bf16.msra.mxu0 %v470
    %490 = vmatprep.subr.bf16.mxu0 0
    %491 = vmatpush1.bf16.msra.mxu0 %v471
    %492 = vmatprep.subr.bf16.mxu0 0
    %493 = vmatpush1.bf16.msra.mxu0 %v472
    %494 = vmatprep.subr.bf16.mxu0 0
    %495 = vmatpush1.bf16.msra.mxu0 %v473
    %496 = vmatprep.subr.bf16.mxu0 0
    %497 = vmatpush1.bf16.msra.mxu0 %v474
    %498 = vmatprep.subr.bf16.mxu0 0
    %499 = vmatpush1.bf16.msra.mxu0 %v475
    %500 = vmatprep.subr.bf16.mxu0 0
    %501 = vmatpush1.bf16.msra.mxu0 0
    %502 = vmatprep.subr.bf16.mxu0 0
    %503 = vmatpush1.bf16.msra.mxu0 0
    %504 = vmatprep.subr.bf16.mxu0 0
    %505 = vmatpush1.bf16.msra.mxu0 0
    %506 = vmatprep.subr.bf16.mxu0 0
    %507 = vmatpush1.bf16.msra.mxu0 0
    %508 = vmatprep.subr.bf16.mxu0 0
    %509 = vmatpush1.bf16.msra.mxu0 0
    %510 = vmatprep.subr.bf16.mxu0 0
    %511 = vmatpush1.bf16.msra.mxu0 0
    %512 = vmatprep.subr.bf16.mxu0 0
    %513 = vmatpush1.bf16.msra.mxu0 0
    %514 = vmatprep.subr.bf16.mxu0 0
    %515 = vmatpush1.bf16.msra.mxu0 0
    %516 = vmatprep.mubr.bf16.mxu0 0
    %517 = vmatmul.mubr.bf16.gmra.mrb[0].mxu0 %v411
    %v518 = vpop.f32.mrb[0].mxu0
    %v519 = vadd.f32 %v434, %v518
    %v520 = vpop.f32.mrb[0].mxu0
    %v521 = vpop.f32.mrb[0].mxu0
    %v522 = vadd.f32 %v434, %v521
    %v523 = vpop.f32.mrb[0].mxu0
    %524 = vmatprep.mubr.bf16.mxu0 0
    %525 = vmatmul.mubr.bf16.gmra.mrb[0].mxu0 %v412
    %v526 = vpop.f32.mrb[0].mxu0
    %v527 = vadd.f32 %v434, %v526
    %v528 = vpop.f32.mrb[0].mxu0
    %v529 = vpop.f32.mrb[0].mxu0
    %v530 = vadd.f32 %v434, %v529
    %v531 = vpop.f32.mrb[0].mxu0
    %532 = vdwg.mxu0
    %v533 = vld [vmem:[#allocation3] sm:$0x80]
    %v534 = vld [vmem:[#allocation3 + $0x8] sm:$0xff]
    %v535 = vld [vmem:[#allocation3 + $0x10] sm:$0xff]
    %v537 = vshll.u32 %v405, 16
    %v539 = vrot.slane %v537, 1
    %v540 = vshrl.u32 %v405, 16
    %v542 = vor.u32 %v540, %v539
    %v544 = vshll.u32 %v406, 16
    %v546 = vrot.slane %v544, 1
    %v547 = vsel %vm166, %v542, %v546
    %v548 = vshrl.u32 %v406, 16
    %v550 = vor.u32 %v548, %v546
    %v551 = vld [vmem:[#allocation9] sm:$0xf]
    %v552 = vld [vmem:[#allocation9 + $0x4] sm:$0xf]
    %v553 = vld [vmem:[#allocation9 + $0x8] sm:$0xf]
    %v554 = vld [vmem:[#allocation9 + $0xc] sm:$0xf]
    %v555 = vld [vmem:[#allocation9 + $0x10] sm:$0xf]
    %v556 = vld [vmem:[#allocation9 + $0x14] sm:$0xf]
    %v557 = vld [vmem:[#allocation9 + $0x18] sm:$0xf]
    %v558 = vld [vmem:[#allocation9 + $0x1c] sm:$0xf]
    %v559 = vld [vmem:[#allocation9 + $0x20] sm:$0xf]
    %v560 = vld [vmem:[#allocation9 + $0x24] sm:$0xf]
    %v561 = vld [vmem:[#allocation9 + $0x28] sm:$0xf]
    %v562 = vld [vmem:[#allocation9 + $0x2c] sm:$0xf]
    %v563 = vld [vmem:[#allocation9 + $0x30] sm:$0xf]
    %v564 = vld [vmem:[#allocation9 + $0x34] sm:$0xf]
    %v565 = vld [vmem:[#allocation9 + $0x38] sm:$0xf]
    %v566 = vld [vmem:[#allocation9 + $0x3c] sm:$0xf]
    %v567 = vld [vmem:[#allocation9 + $0x40] sm:$0xf]
    %v568 = vld [vmem:[#allocation9 + $0x44] sm:$0xf]
    %v569 = vld [vmem:[#allocation9 + $0x48] sm:$0xf]
    %v570 = vld [vmem:[#allocation9 + $0x4c] sm:$0xf]
    %v571 = vld [vmem:[#allocation9 + $0x50] sm:$0xf]
    %v572 = vld [vmem:[#allocation9 + $0x54] sm:$0xf]
    %v573 = vld [vmem:[#allocation9 + $0x58] sm:$0xf]
    %v574 = vld [vmem:[#allocation9 + $0x5c] sm:$0xf]
    %v575 = vld [vmem:[#allocation9 + $0x60] sm:$0xf]
    %v576 = vld [vmem:[#allocation9 + $0x64] sm:$0xf]
    %v577 = vld [vmem:[#allocation9 + $0x68] sm:$0xf]
    %v578 = vld [vmem:[#allocation9 + $0x6c] sm:$0xf]
    %v579 = vld [vmem:[#allocation9 + $0x70] sm:$0xf]
    %v580 = vld [vmem:[#allocation9 + $0x74] sm:$0xf]
    %v581 = vld [vmem:[#allocation9 + $0x78] sm:$0xf]
    %v582 = vld [vmem:[#allocation9 + $0x7c] sm:$0xf]
    %v583 = vld [vmem:[%s4] sm:$0x1]
    %v585 = vlaneseq
    %v586 = vshrl.u32 %v585, 7
    %v587 = vsub.s32 0, %v586
    %v588 = vrot.slane %v583, %v587
    %v591 = vshrl.u32 %v533, 16
    %v593 = vrot.slane %v591, 7
    %v595 = vshrl.u32 %v534, 16
    %v597 = vrot.slane %v595, 7
    %v598 = vshll.u32 %v534, 16
    %v600 = vor.u32 %v597, %v598
    %v601 = vsel %vm221, %v593, %v600
    %v603 = vshrl.u32 %v539, 16
    %v605 = vrot.slane %v603, 7
    %v607 = vshrl.u32 %v547, 16
    %v609 = vrot.slane %v607, 7
    %v610 = vshll.u32 %v547, 16
    %v612 = vor.u32 %v609, %v610
    %v613 = vsel %vm221, %v605, %v612
    %v615 = vshrl.u32 %v535, 16
    %v617 = vrot.slane %v615, 7
    %v618 = vshll.u32 %v535, 16
    %v620 = vor.u32 %v617, %v618
    %v621 = vsel %vm221, %v597, %v620
    %v623 = vshrl.u32 %v550, 16
    %v625 = vrot.slane %v623, 7
    %v626 = vshll.u32 %v550, 16
    %v628 = vor.u32 %v625, %v626
    %v629 = vsel %vm221, %v609, %v628
    %v666 = vunpack.c.l.b16 %v551
    %v667 = vunpack.c.l.b16 %v552
    %v668 = vunpack.c.l.b16 %v553
    %v669 = vunpack.c.l.b16 %v554
    %v670 = vunpack.c.l.b16 %v555
    %v671 = vunpack.c.l.b16 %v556
    %v672 = vunpack.c.l.b16 %v557
    %v673 = vunpack.c.l.b16 %v558
    %v674 = vunpack.c.l.b16 %v559
    %v675 = vunpack.c.l.b16 %v560
    %v676 = vunpack.c.l.b16 %v561
    %v677 = vunpack.c.l.b16 %v562
    %v678 = vunpack.c.l.b16 %v563
    %v679 = vunpack.c.l.b16 %v564
    %v680 = vunpack.c.l.b16 %v565
    %v681 = vunpack.c.l.b16 %v566
    %v682 = vunpack.c.l.b16 %v567
    %v683 = vunpack.c.l.b16 %v568
    %v684 = vunpack.c.l.b16 %v569
    %v685 = vunpack.c.l.b16 %v570
    %v686 = vunpack.c.l.b16 %v571
    %v687 = vunpack.c.l.b16 %v572
    %v688 = vunpack.c.l.b16 %v573
    %v689 = vunpack.c.l.b16 %v574
    %v690 = vunpack.c.l.b16 %v575
    %v691 = vunpack.c.l.b16 %v576
    %v692 = vunpack.c.l.b16 %v577
    %v693 = vunpack.c.l.b16 %v578
    %v694 = vunpack.c.l.b16 %v579
    %v695 = vunpack.c.l.b16 %v580
    %v696 = vunpack.c.l.b16 %v581
    %v697 = vunpack.c.l.b16 %v582
    %v698 = vpack.c.b16 %v667, %v666
    %v699 = vpack.c.b16 %v669, %v668
    %v700 = vpack.c.b16 %v671, %v670
    %v701 = vpack.c.b16 %v673, %v672
    %v702 = vpack.c.b16 %v675, %v674
    %v703 = vpack.c.b16 %v677, %v676
    %v704 = vpack.c.b16 %v679, %v678
    %v705 = vpack.c.b16 %v681, %v680
    %v706 = vpack.c.b16 %v683, %v682
    %v707 = vpack.c.b16 %v685, %v684
    %v708 = vpack.c.b16 %v687, %v686
    %v709 = vpack.c.b16 %v689, %v688
    %v710 = vpack.c.b16 %v691, %v690
    %v711 = vpack.c.b16 %v693, %v692
    %v712 = vpack.c.b16 %v695, %v694
    %v713 = vpack.c.b16 %v697, %v696
    %730 = vmatprep.subr.bf16.mxu0 0
    %731 = vmatpush1.bf16.msra.mxu0 %v698
    %732 = vmatprep.subr.bf16.mxu0 0
    %733 = vmatpush1.bf16.msra.mxu0 %v699
    %734 = vmatprep.subr.bf16.mxu0 0
    %735 = vmatpush1.bf16.msra.mxu0 %v700
    %736 = vmatprep.subr.bf16.mxu0 0
    %737 = vmatpush1.bf16.msra.mxu0 %v701
    %738 = vmatprep.subr.bf16.mxu0 0
    %739 = vmatpush1.bf16.msra.mxu0 %v702
    %740 = vmatprep.subr.bf16.mxu0 0
    %741 = vmatpush1.bf16.msra.mxu0 %v703
    %742 = vmatprep.subr.bf16.mxu0 0
    %743 = vmatpush1.bf16.msra.mxu0 %v704
    %744 = vmatprep.subr.bf16.mxu0 0
    %745 = vmatpush1.bf16.msra.mxu0 %v705
    %746 = vmatprep.subr.bf16.mxu0 0
    %747 = vmatpush1.bf16.msra.mxu0 %v706
    %748 = vmatprep.subr.bf16.mxu0 0
    %749 = vmatpush1.bf16.msra.mxu0 %v707
    %750 = vmatprep.subr.bf16.mxu0 0
    %751 = vmatpush1.bf16.msra.mxu0 %v708
    %752 = vmatprep.subr.bf16.mxu0 0
    %753 = vmatpush1.bf16.msra.mxu0 %v709
    %754 = vmatprep.subr.bf16.mxu0 0
    %755 = vmatpush1.bf16.msra.mxu0 %v710
    %756 = vmatprep.subr.bf16.mxu0 0
    %757 = vmatpush1.bf16.msra.mxu0 %v711
    %758 = vmatprep.subr.bf16.mxu0 0
    %759 = vmatpush1.bf16.msra.mxu0 %v712
    %760 = vmatprep.subr.bf16.mxu0 0
    %761 = vmatpush1.bf16.msra.mxu0 %v713
    %762 = vmatprep.mubr.bf16.mxu0 %v613
    %763 = vmatmul.mubr.bf16.gmra.mrb[0].mxu0 %v601
    %v764 = vpop.f32.mrb[0].mxu0
    %v765 = vadd.f32 %v588, %v764
    %v766 = vpop.f32.mrb[0].mxu0
    %v767 = vpop.f32.mrb[0].mxu0
    %v768 = vadd.f32 %v588, %v767
    %v769 = vpop.f32.mrb[0].mxu0
    %770 = vmatprep.mubr.bf16.mxu0 %v629
    %771 = vmatmul.mubr.bf16.gmra.mrb[0].mxu0 %v621
    %v772 = vpop.f32.mrb[0].mxu0
    %v773 = vadd.f32 %v588, %v772
    %v774 = vpop.f32.mrb[0].mxu0
    %v775 = vpop.f32.mrb[0].mxu0
    %v776 = vadd.f32 %v588, %v775
    %v777 = vpop.f32.mrb[0].mxu0
    %778 = vdwg.mxu0
    %v779 = vmax.f32 %v765, 0.0
    %v780 = vmax.f32 %v768, 0.0
    %v781 = vmax.f32 %v773, 0.0
    %v782 = vmax.f32 %v776, 0.0
    %v783 = vadd.f32 %v779, %v519
    %v784 = vadd.f32 %v780, %v522
    %v785 = vadd.f32 %v781, %v527
    %v786 = vadd.f32 %v782, %v530
    %v787 = vmax.f32 %v783, 0.0
    %v788 = vmax.f32 %v784, 0.0
    %v789 = vmax.f32 %v785, 0.0
    %v790 = vmax.f32 %v786, 0.0
    %v791 = vpack.c.bf16 %v788, %v787
    %v792 = vpack.c.bf16 %v790, %v789
    %793 = vst [vmem:[#allocation2 + $0x8] sm:$0xff] %v791
    %794 = vst [vmem:[#allocation2 + $0x10] sm:$0xff] %v792
    %795 = vst [vmem:[#allocation2 + $0x8] sm:$0xf0] 0
    %796 = vst [vmem:[#allocation2 + $0x10] sm:$0xf] 0
    %v797 = vld [vmem:[#allocation2] sm:$0x80]
    %v798 = vld [vmem:[#allocation2 + $0x8] sm:$0xff]
    %v799 = vld [vmem:[#allocation2 + $0x10] sm:$0x7f]
    %v800 = vld [vmem:[#allocation2 + $0x10] sm:$0xff]
    %vm803 = vcmask 1046528
    %v804 = vrot.slane %v798, 1
    %v805 = vrot.slane %v800, 1
    %v806 = vsel %vm803, %v804, %v805
    %v807 = vld [vmem:[#allocation12] sm:$0xf]
    %v808 = vld [vmem:[#allocation12 + $0x4] sm:$0xf]
    %v809 = vld [vmem:[#allocation12 + $0x8] sm:$0xf]
    %v810 = vld [vmem:[#allocation12 + $0xc] sm:$0xf]
    %v811 = vld [vmem:[#allocation12 + $0x10] sm:$0xf]
    %v812 = vld [vmem:[#allocation12 + $0x14] sm:$0xf]
    %v813 = vld [vmem:[#allocation12 + $0x18] sm:$0xf]
    %v814 = vld [vmem:[#allocation12 + $0x1c] sm:$0xf]
    %v815 = vld [vmem:[#allocation12 + $0x20] sm:$0xf]
    %v816 = vld [vmem:[#allocation12 + $0x24] sm:$0xf]
    %v817 = vld [vmem:[#allocation12 + $0x28] sm:$0xf]
    %v818 = vld [vmem:[#allocation12 + $0x2c] sm:$0xf]
    %v819 = vld [vmem:[#allocation12 + $0x30] sm:$0xf]
    %v820 = vld [vmem:[#allocation12 + $0x34] sm:$0xf]
    %v821 = vld [vmem:[#allocation12 + $0x38] sm:$0xf]
    %v822 = vld [vmem:[#allocation12 + $0x3c] sm:$0xf]
    %v823 = vld [vmem:[#allocation12 + $0x40] sm:$0xf]
    %v824 = vld [vmem:[#allocation12 + $0x44] sm:$0xf]
    %v825 = vld [vmem:[#allocation12 + $0x48] sm:$0xf]
    %v826 = vld [vmem:[#allocation12 + $0x4c] sm:$0xf]
    %v827 = vld [vmem:[#allocation12 + $0x50] sm:$0xf]
    %v828 = vld [vmem:[#allocation12 + $0x54] sm:$0xf]
    %v829 = vld [vmem:[#allocation12 + $0x58] sm:$0xf]
    %v830 = vld [vmem:[#allocation12 + $0x5c] sm:$0xf]
    %v831 = vld [vmem:[#allocation12 + $0x60] sm:$0xf]
    %v832 = vld [vmem:[#allocation12 + $0x64] sm:$0xf]
    %v833 = vld [vmem:[#allocation12 + $0x68] sm:$0xf]
    %v834 = vld [vmem:[#allocation12 + $0x6c] sm:$0xf]
    %v835 = vld [vmem:[#allocation12 + $0x70] sm:$0xf]
    %v836 = vld [vmem:[#allocation12 + $0x74] sm:$0xf]
    %v837 = vld [vmem:[#allocation12 + $0x78] sm:$0xf]
    %v838 = vld [vmem:[#allocation12 + $0x7c] sm:$0xf]
    %v839 = vld [vmem:[%s8] sm:$0x1]
    %v841 = vlaneseq
    %v842 = vshrl.u32 %v841, 7
    %v843 = vsub.s32 0, %v842
    %v844 = vrot.slane %v839, %v843
    %vm848 = vcmask 1040384
    %v849 = vrot.slane %v797, 7
    %v850 = vrot.slane %v798, 7
    %v851 = vsel %vm848, %v849, %v850
    %v852 = vrot.slane %v804, 7
    %v853 = vrot.slane %v806, 7
    %v854 = vsel %vm848, %v852, %v853
    %v855 = vrot.slane %v799, 7
    %v856 = vsel %vm848, %v850, %v855
    %v857 = vrot.slane %v805, 7
    %v858 = vsel %vm848, %v853, %v857
    %v895 = vunpack.c.l.b16 %v807
    %v896 = vunpack.c.l.b16 %v808
    %v897 = vunpack.c.l.b16 %v809
    %v898 = vunpack.c.l.b16 %v810
    %v899 = vunpack.c.l.b16 %v811
    %v900 = vunpack.c.l.b16 %v812
    %v901 = vunpack.c.l.b16 %v813
    %v902 = vunpack.c.l.b16 %v814
    %v903 = vunpack.c.l.b16 %v815
    %v904 = vunpack.c.l.b16 %v816
    %v905 = vunpack.c.l.b16 %v817
    %v906 = vunpack.c.l.b16 %v818
    %v907 = vunpack.c.l.b16 %v819
    %v908 = vunpack.c.l.b16 %v820
    %v909 = vunpack.c.l.b16 %v821
    %v910 = vunpack.c.l.b16 %v822
    %v911 = vunpack.c.l.b16 %v823
    %v912 = vunpack.c.l.b16 %v824
    %v913 = vunpack.c.l.b16 %v825
    %v914 = vunpack.c.l.b16 %v826
    %v915 = vunpack.c.l.b16 %v827
    %v916 = vunpack.c.l.b16 %v828
    %v917 = vunpack.c.l.b16 %v829
    %v918 = vunpack.c.l.b16 %v830
    %v919 = vunpack.c.l.b16 %v831
    %v920 = vunpack.c.l.b16 %v832
    %v921 = vunpack.c.l.b16 %v833
    %v922 = vunpack.c.l.b16 %v834
    %v923 = vunpack.c.l.b16 %v835
    %v924 = vunpack.c.l.b16 %v836
    %v925 = vunpack.c.l.b16 %v837
    %v926 = vunpack.c.l.b16 %v838
    %v927 = vpack.c.b16 %v896, %v895
    %v928 = vpack.c.b16 %v898, %v897
    %v929 = vpack.c.b16 %v900, %v899
    %v930 = vpack.c.b16 %v902, %v901
    %v931 = vpack.c.b16 %v904, %v903
    %v932 = vpack.c.b16 %v906, %v905
    %v933 = vpack.c.b16 %v908, %v907
    %v934 = vpack.c.b16 %v910, %v909
    %v935 = vpack.c.b16 %v912, %v911
    %v936 = vpack.c.b16 %v914, %v913
    %v937 = vpack.c.b16 %v916, %v915
    %v938 = vpack.c.b16 %v918, %v917
    %v939 = vpack.c.b16 %v920, %v919
    %v940 = vpack.c.b16 %v922, %v921
    %v941 = vpack.c.b16 %v924, %v923
    %v942 = vpack.c.b16 %v926, %v925
    %959 = vmatprep.subr.bf16.mxu0 0
    %960 = vmatpush1.bf16.msra.mxu0 %v927
    %961 = vmatprep.subr.bf16.mxu0 0
    %962 = vmatpush1.bf16.msra.mxu0 %v928
    %963 = vmatprep.subr.bf16.mxu0 0
    %964 = vmatpush1.bf16.msra.mxu0 %v929
    %965 = vmatprep.subr.bf16.mxu0 0
    %966 = vmatpush1.bf16.msra.mxu0 %v930
    %967 = vmatprep.subr.bf16.mxu0 0
    %968 = vmatpush1.bf16.msra.mxu0 %v931
    %969 = vmatprep.subr.bf16.mxu0 0
    %970 = vmatpush1.bf16.msra.mxu0 %v932
    %971 = vmatprep.subr.bf16.mxu0 0
    %972 = vmatpush1.bf16.msra.mxu0 %v933
    %973 = vmatprep.subr.bf16.mxu0 0
    %974 = vmatpush1.bf16.msra.mxu0 %v934
    %975 = vmatprep.subr.bf16.mxu0 0
    %976 = vmatpush1.bf16.msra.mxu0 %v935
    %977 = vmatprep.subr.bf16.mxu0 0
    %978 = vmatpush1.bf16.msra.mxu0 %v936
    %979 = vmatprep.subr.bf16.mxu0 0
    %980 = vmatpush1.bf16.msra.mxu0 %v937
    %981 = vmatprep.subr.bf16.mxu0 0
    %982 = vmatpush1.bf16.msra.mxu0 %v938
    %983 = vmatprep.subr.bf16.mxu0 0
    %984 = vmatpush1.bf16.msra.mxu0 %v939
    %985 = vmatprep.subr.bf16.mxu0 0
    %986 = vmatpush1.bf16.msra.mxu0 %v940
    %987 = vmatprep.subr.bf16.mxu0 0
    %988 = vmatpush1.bf16.msra.mxu0 %v941
    %989 = vmatprep.subr.bf16.mxu0 0
    %990 = vmatpush1.bf16.msra.mxu0 %v942
    %991 = vmatprep.mubr.bf16.mxu0 %v854
    %992 = vmatmul.mubr.bf16.gmra.mrb[0].mxu0 %v851
    %v993 = vpop.f32.mrb[0].mxu0
    %v994 = vadd.f32 %v844, %v993
    %v995 = vpop.f32.mrb[0].mxu0
    %v996 = vpop.f32.mrb[0].mxu0
    %v997 = vadd.f32 %v844, %v996
    %v998 = vpop.f32.mrb[0].mxu0
    %999 = vmatprep.mubr.bf16.mxu0 %v858
    %1000 = vmatmul.mubr.bf16.gmra.mrb[0].mxu0 %v856
    %v1001 = vpop.f32.mrb[0].mxu0
    %v1002 = vadd.f32 %v844, %v1001
    %v1003 = vpop.f32.mrb[0].mxu0
    %v1004 = vpop.f32.mrb[0].mxu0
    %v1005 = vadd.f32 %v844, %v1004
    %v1006 = vpop.f32.mrb[0].mxu0
    %1007 = vdwg.mxu0
    %v1008 = vmax.f32 %v994, 0.0
    %v1009 = vmax.f32 %v997, 0.0
    %v1010 = vmax.f32 %v1002, 0.0
    %v1011 = vmax.f32 %v1005, 0.0
    %v1012 = vpack.c.bf16 %v1009, %v1008
    %v1013 = vpack.c.bf16 %v1011, %v1010
    %1014 = vst [vmem:[#allocation3 + $0x8] sm:$0xff] %v1012
    %1015 = vst [vmem:[#allocation3 + $0x10] sm:$0xff] %v1013
    %1016 = vst [vmem:[#allocation3 + $0x8] sm:$0xf0] 0
    %1017 = vst [vmem:[#allocation3 + $0x10] sm:$0xf] 0
    %v1018 = vld [vmem:[#allocation2 + $0x8] sm:$0xff]
    %v1019 = vld [vmem:[#allocation2 + $0x10] sm:$0xff]
    %v1020 = vunpack.c.l.bf16 %v1018
    %v1021 = vunpack.c.h.bf16 %v1018
    %v1022 = vunpack.c.l.bf16 %v1019
    %v1023 = vunpack.c.h.bf16 %v1019
    %v1024 = vld [vmem:[#allocation3] sm:$0x80]
    %v1025 = vld [vmem:[#allocation3 + $0x8] sm:$0xff]
    %v1026 = vld [vmem:[#allocation3 + $0x10] sm:$0x7f]
    %v1029 = vrot.slane %v1012, 1
    %v1030 = vrot.slane %v1013, 1
    %v1031 = vsel %vm803, %v1029, %v1030
    %v1032 = vld [vmem:[#allocation13] sm:$0xf]
    %v1033 = vld [vmem:[#allocation13 + $0x4] sm:$0xf]
    %v1034 = vld [vmem:[#allocation13 + $0x8] sm:$0xf]
    %v1035 = vld [vmem:[#allocation13 + $0xc] sm:$0xf]
    %v1036 = vld [vmem:[#allocation13 + $0x10] sm:$0xf]
    %v1037 = vld [vmem:[#allocation13 + $0x14] sm:$0xf]
    %v1038 = vld [vmem:[#allocation13 + $0x18] sm:$0xf]
    %v1039 = vld [vmem:[#allocation13 + $0x1c] sm:$0xf]
    %v1040 = vld [vmem:[#allocation13 + $0x20] sm:$0xf]
    %v1041 = vld [vmem:[#allocation13 + $0x24] sm:$0xf]
    %v1042 = vld [vmem:[#allocation13 + $0x28] sm:$0xf]
    %v1043 = vld [vmem:[#allocation13 + $0x2c] sm:$0xf]
    %v1044 = vld [vmem:[#allocation13 + $0x30] sm:$0xf]
    %v1045 = vld [vmem:[#allocation13 + $0x34] sm:$0xf]
    %v1046 = vld [vmem:[#allocation13 + $0x38] sm:$0xf]
    %v1047 = vld [vmem:[#allocation13 + $0x3c] sm:$0xf]
    %v1048 = vld [vmem:[#allocation13 + $0x40] sm:$0xf]
    %v1049 = vld [vmem:[#allocation13 + $0x44] sm:$0xf]
    %v1050 = vld [vmem:[#allocation13 + $0x48] sm:$0xf]
    %v1051 = vld [vmem:[#allocation13 + $0x4c] sm:$0xf]
    %v1052 = vld [vmem:[#allocation13 + $0x50] sm:$0xf]
    %v1053 = vld [vmem:[#allocation13 + $0x54] sm:$0xf]
    %v1054 = vld [vmem:[#allocation13 + $0x58] sm:$0xf]
    %v1055 = vld [vmem:[#allocation13 + $0x5c] sm:$0xf]
    %v1056 = vld [vmem:[#allocation13 + $0x60] sm:$0xf]
    %v1057 = vld [vmem:[#allocation13 + $0x64] sm:$0xf]
    %v1058 = vld [vmem:[#allocation13 + $0x68] sm:$0xf]
    %v1059 = vld [vmem:[#allocation13 + $0x6c] sm:$0xf]
    %v1060 = vld [vmem:[#allocation13 + $0x70] sm:$0xf]
    %v1061 = vld [vmem:[#allocation13 + $0x74] sm:$0xf]
    %v1062 = vld [vmem:[#allocation13 + $0x78] sm:$0xf]
    %v1063 = vld [vmem:[#allocation13 + $0x7c] sm:$0xf]
    %v1064 = vld [vmem:[%s10] sm:$0x1]
    %v1066 = vlaneseq
    %v1067 = vshrl.u32 %v1066, 7
    %v1068 = vsub.s32 0, %v1067
    %v1069 = vrot.slane %v1064, %v1068
    %v1074 = vrot.slane %v1024, 7
    %v1075 = vrot.slane %v1025, 7
    %v1076 = vsel %vm848, %v1074, %v1075
    %v1077 = vrot.slane %v1029, 7
    %v1078 = vrot.slane %v1031, 7
    %v1079 = vsel %vm848, %v1077, %v1078
    %v1080 = vrot.slane %v1026, 7
    %v1081 = vsel %vm848, %v1075, %v1080
    %v1082 = vrot.slane %v1030, 7
    %v1083 = vsel %vm848, %v1078, %v1082
    %v1120 = vunpack.c.l.b16 %v1032
    %v1121 = vunpack.c.l.b16 %v1033
    %v1122 = vunpack.c.l.b16 %v1034
    %v1123 = vunpack.c.l.b16 %v1035
    %v1124 = vunpack.c.l.b16 %v1036
    %v1125 = vunpack.c.l.b16 %v1037
    %v1126 = vunpack.c.l.b16 %v1038
    %v1127 = vunpack.c.l.b16 %v1039
    %v1128 = vunpack.c.l.b16 %v1040
    %v1129 = vunpack.c.l.b16 %v1041
    %v1130 = vunpack.c.l.b16 %v1042
    %v1131 = vunpack.c.l.b16 %v1043
    %v1132 = vunpack.c.l.b16 %v1044
    %v1133 = vunpack.c.l.b16 %v1045
    %v1134 = vunpack.c.l.b16 %v1046
    %v1135 = vunpack.c.l.b16 %v1047
    %v1136 = vunpack.c.l.b16 %v1048
    %v1137 = vunpack.c.l.b16 %v1049
    %v1138 = vunpack.c.l.b16 %v1050
    %v1139 = vunpack.c.l.b16 %v1051
    %v1140 = vunpack.c.l.b16 %v1052
    %v1141 = vunpack.c.l.b16 %v1053
    %v1142 = vunpack.c.l.b16 %v1054
    %v1143 = vunpack.c.l.b16 %v1055
    %v1144 = vunpack.c.l.b16 %v1056
    %v1145 = vunpack.c.l.b16 %v1057
    %v1146 = vunpack.c.l.b16 %v1058
    %v1147 = vunpack.c.l.b16 %v1059
    %v1148 = vunpack.c.l.b16 %v1060
    %v1149 = vunpack.c.l.b16 %v1061
    %v1150 = vunpack.c.l.b16 %v1062
    %v1151 = vunpack.c.l.b16 %v1063
    %v1152 = vpack.c.b16 %v1121, %v1120
    %v1153 = vpack.c.b16 %v1123, %v1122
    %v1154 = vpack.c.b16 %v1125, %v1124
    %v1155 = vpack.c.b16 %v1127, %v1126
    %v1156 = vpack.c.b16 %v1129, %v1128
    %v1157 = vpack.c.b16 %v1131, %v1130
    %v1158 = vpack.c.b16 %v1133, %v1132
    %v1159 = vpack.c.b16 %v1135, %v1134
    %v1160 = vpack.c.b16 %v1137, %v1136
    %v1161 = vpack.c.b16 %v1139, %v1138
    %v1162 = vpack.c.b16 %v1141, %v1140
    %v1163 = vpack.c.b16 %v1143, %v1142
    %v1164 = vpack.c.b16 %v1145, %v1144
    %v1165 = vpack.c.b16 %v1147, %v1146
    %v1166 = vpack.c.b16 %v1149, %v1148
    %v1167 = vpack.c.b16 %v1151, %v1150
    %1184 = vmatprep.subr.bf16.mxu0 0
    %1185 = vmatpush1.bf16.msra.mxu0 %v1152
    %1186 = vmatprep.subr.bf16.mxu0 0
    %1187 = vmatpush1.bf16.msra.mxu0 %v1153
    %1188 = vmatprep.subr.bf16.mxu0 0
    %1189 = vmatpush1.bf16.msra.mxu0 %v1154
    %1190 = vmatprep.subr.bf16.mxu0 0
    %1191 = vmatpush1.bf16.msra.mxu0 %v1155
    %1192 = vmatprep.subr.bf16.mxu0 0
    %1193 = vmatpush1.bf16.msra.mxu0 %v1156
    %1194 = vmatprep.subr.bf16.mxu0 0
    %1195 = vmatpush1.bf16.msra.mxu0 %v1157
    %1196 = vmatprep.subr.bf16.mxu0 0
    %1197 = vmatpush1.bf16.msra.mxu0 %v1158
    %1198 = vmatprep.subr.bf16.mxu0 0
    %1199 = vmatpush1.bf16.msra.mxu0 %v1159
    %1200 = vmatprep.subr.bf16.mxu0 0
    %1201 = vmatpush1.bf16.msra.mxu0 %v1160
    %1202 = vmatprep.subr.bf16.mxu0 0
    %1203 = vmatpush1.bf16.msra.mxu0 %v1161
    %1204 = vmatprep.subr.bf16.mxu0 0
    %1205 = vmatpush1.bf16.msra.mxu0 %v1162
    %1206 = vmatprep.subr.bf16.mxu0 0
    %1207 = vmatpush1.bf16.msra.mxu0 %v1163
    %1208 = vmatprep.subr.bf16.mxu0 0
    %1209 = vmatpush1.bf16.msra.mxu0 %v1164
    %1210 = vmatprep.subr.bf16.mxu0 0
    %1211 = vmatpush1.bf16.msra.mxu0 %v1165
    %1212 = vmatprep.subr.bf16.mxu0 0
    %1213 = vmatpush1.bf16.msra.mxu0 %v1166
    %1214 = vmatprep.subr.bf16.mxu0 0
    %1215 = vmatpush1.bf16.msra.mxu0 %v1167
    %1216 = vmatprep.mubr.bf16.mxu0 %v1079
    %1217 = vmatmul.mubr.bf16.gmra.mrb[0].mxu0 %v1076
    %v1218 = vpop.f32.mrb[0].mxu0
    %v1219 = vadd.f32 %v1069, %v1218
    %v1220 = vpop.f32.mrb[0].mxu0
    %v1221 = vpop.f32.mrb[0].mxu0
    %v1222 = vadd.f32 %v1069, %v1221
    %v1223 = vpop.f32.mrb[0].mxu0
    %1224 = vmatprep.mubr.bf16.mxu0 %v1083
    %1225 = vmatmul.mubr.bf16.gmra.mrb[0].mxu0 %v1081
    %v1226 = vpop.f32.mrb[0].mxu0
    %v1227 = vadd.f32 %v1069, %v1226
    %v1228 = vpop.f32.mrb[0].mxu0
    %v1229 = vpop.f32.mrb[0].mxu0
    %v1230 = vadd.f32 %v1069, %v1229
    %v1231 = vpop.f32.mrb[0].mxu0
    %1232 = vdwg.mxu0
    %v1233 = vmax.f32 %v1219, 0.0
    %v1234 = vmax.f32 %v1222, 0.0
    %v1235 = vmax.f32 %v1227, 0.0
    %v1236 = vmax.f32 %v1230, 0.0
    %v1237 = vadd.f32 %v1233, %v1020
    %v1238 = vadd.f32 %v1234, %v1021
    %v1239 = vadd.f32 %v1235, %v1022
    %v1240 = vadd.f32 %v1236, %v1023
    %v1241 = vmax.f32 %v1237, 0.0
    %v1242 = vmax.f32 %v1238, 0.0
    %v1243 = vmax.f32 %v1239, 0.0
    %v1244 = vmax.f32 %v1240, 0.0
    %v1245 = vpack.c.bf16 %v1242, %v1241
    %v1246 = vpack.c.bf16 %v1244, %v1243
    %1247 = vst [vmem:[#allocation2 + $0x8] sm:$0xff] %v1245
    %1248 = vst [vmem:[#allocation2 + $0x10] sm:$0xff] %v1246
    %1249 = vst [vmem:[#allocation2 + $0x8] sm:$0xf0] 0
    %1250 = vst [vmem:[#allocation2 + $0x10] sm:$0xf] 0
    %v1251 = vld [vmem:[#allocation2 + $0x8] sm:$0xff]
    %v1252 = vld [vmem:[#allocation2 + $0x10] sm:$0xff]
    %v1253 = vld [vmem:[#allocation15] sm:$0xf]
    %v1254 = vld [vmem:[#allocation15 + $0x4] sm:$0xf]
    %v1255 = vld [vmem:[#allocation15 + $0x8] sm:$0xf]
    %v1256 = vld [vmem:[#allocation15 + $0xc] sm:$0xf]
    %v1257 = vld [vmem:[#allocation15 + $0x10] sm:$0xf]
    %v1258 = vld [vmem:[#allocation15 + $0x14] sm:$0xf]
    %v1259 = vld [vmem:[#allocation15 + $0x18] sm:$0xf]
    %v1260 = vld [vmem:[#allocation15 + $0x1c] sm:$0xf]
    %v1261 = vld [vmem:[#allocation15 + $0x20] sm:$0xf]
    %v1262 = vld [vmem:[#allocation15 + $0x24] sm:$0xf]
    %v1263 = vld [vmem:[#allocation15 + $0x28] sm:$0xf]
    %v1264 = vld [vmem:[#allocation15 + $0x2c] sm:$0xf]
    %v1265 = vld [vmem:[#allocation15 + $0x30] sm:$0xf]
    %v1266 = vld [vmem:[#allocation15 + $0x34] sm:$0xf]
    %v1267 = vld [vmem:[#allocation15 + $0x38] sm:$0xf]
    %v1268 = vld [vmem:[#allocation15 + $0x3c] sm:$0xf]
    %v1269 = vld [vmem:[%s12] sm:$0x1]
    %v1271 = vlaneseq
    %v1272 = vshrl.u32 %v1271, 7
    %v1273 = vsub.s32 0, %v1272
    %v1274 = vrot.slane %v1269, %v1273
    %v1292 = vunpack.c.l.b16 %v1253
    %v1293 = vunpack.c.l.b16 %v1254
    %v1294 = vunpack.c.l.b16 %v1255
    %v1295 = vunpack.c.l.b16 %v1256
    %v1296 = vunpack.c.l.b16 %v1257
    %v1297 = vunpack.c.l.b16 %v1258
    %v1298 = vunpack.c.l.b16 %v1259
    %v1299 = vunpack.c.l.b16 %v1260
    %v1300 = vunpack.c.l.b16 %v1261
    %v1301 = vunpack.c.l.b16 %v1262
    %v1302 = vunpack.c.l.b16 %v1263
    %v1303 = vunpack.c.l.b16 %v1264
    %v1304 = vunpack.c.l.b16 %v1265
    %v1305 = vunpack.c.l.b16 %v1266
    %v1306 = vunpack.c.l.b16 %v1267
    %v1307 = vunpack.c.l.b16 %v1268
    %v1308 = vpack.c.b16 %v1293, %v1292
    %v1309 = vpack.c.b16 %v1295, %v1294
    %v1310 = vpack.c.b16 %v1297, %v1296
    %v1311 = vpack.c.b16 %v1299, %v1298
    %v1312 = vpack.c.b16 %v1301, %v1300
    %v1313 = vpack.c.b16 %v1303, %v1302
    %v1314 = vpack.c.b16 %v1305, %v1304
    %v1315 = vpack.c.b16 %v1307, %v1306
    %1324 = vmatprep.subr.bf16.mxu0 0
    %1325 = vmatpush1.bf16.msra.mxu0 %v1308
    %1326 = vmatprep.subr.bf16.mxu0 0
    %1327 = vmatpush1.bf16.msra.mxu0 %v1309
    %1328 = vmatprep.subr.bf16.mxu0 0
    %1329 = vmatpush1.bf16.msra.mxu0 %v1310
    %1330 = vmatprep.subr.bf16.mxu0 0
    %1331 = vmatpush1.bf16.msra.mxu0 %v1311
    %1332 = vmatprep.subr.bf16.mxu0 0
    %1333 = vmatpush1.bf16.msra.mxu0 %v1312
    %1334 = vmatprep.subr.bf16.mxu0 0
    %1335 = vmatpush1.bf16.msra.mxu0 %v1313
    %1336 = vmatprep.subr.bf16.mxu0 0
    %1337 = vmatpush1.bf16.msra.mxu0 %v1314
    %1338 = vmatprep.subr.bf16.mxu0 0
    %1339 = vmatpush1.bf16.msra.mxu0 %v1315
    %1340 = vmatprep.subr.bf16.mxu0 0
    %1341 = vmatpush1.bf16.msra.mxu0 0
    %1342 = vmatprep.subr.bf16.mxu0 0
    %1343 = vmatpush1.bf16.msra.mxu0 0
    %1344 = vmatprep.subr.bf16.mxu0 0
    %1345 = vmatpush1.bf16.msra.mxu0 0
    %1346 = vmatprep.subr.bf16.mxu0 0
    %1347 = vmatpush1.bf16.msra.mxu0 0
    %1348 = vmatprep.subr.bf16.mxu0 0
    %1349 = vmatpush1.bf16.msra.mxu0 0
    %1350 = vmatprep.subr.bf16.mxu0 0
    %1351 = vmatpush1.bf16.msra.mxu0 0
    %1352 = vmatprep.subr.bf16.mxu0 0
    %1353 = vmatpush1.bf16.msra.mxu0 0
    %1354 = vmatprep.subr.bf16.mxu0 0
    %1355 = vmatpush1.bf16.msra.mxu0 0
    %1356 = vmatprep.mubr.bf16.mxu0 0
    %1357 = vmatmul.mubr.bf16.gmra.mrb[0].mxu0 %v1251
    %v1358 = vpop.f32.mrb[0].mxu0
    %v1359 = vadd.f32 %v1274, %v1358
    %v1360 = vpop.f32.mrb[0].mxu0
    %v1361 = vpop.f32.mrb[0].mxu0
    %v1362 = vpop.f32.mrb[0].mxu0
    %1363 = vmatprep.mubr.bf16.mxu0 0
    %1364 = vmatmul.mubr.bf16.gmra.mrb[0].mxu0 %v1252
    %v1365 = vpop.f32.mrb[0].mxu0
    %v1366 = vpop.f32.mrb[0].mxu0
    %v1367 = vpop.f32.mrb[0].mxu0
    %v1368 = vadd.f32 %v1274, %v1367
    %v1369 = vpop.f32.mrb[0].mxu0
    %1370 = vdwg.mxu0
    %v1371 = vld [vmem:[%s13] sm:$0xff]
    %v1372 = vld [vmem:[%s14] sm:$0x1]
    %v1373 = vmul.f32 %v1359, %v1371
    %v1374 = vrot.slane %v1373, 4
    %v1375 = vadd.f32 %v1373, %v1374
    %v1376 = vrot.slane %v1375, 2
    %v1377 = vadd.f32 %v1375, %v1376
    %v1378 = vrot.slane %v1377, 1
    %v1379 = vadd.f32 %v1377, %v1378
    %v1380 = vadd.f32 %v1379, %v1372
    %1381 = vst [vmem:[#allocation16 - $0x7] sm:$0x80] %v1359
    %1382 = vst [vmem:[#allocation16 + $0x1] sm:$0x1] %v1380
    %v1383 = vmul.f32 %v1368, %v1371
    %v1384 = vrot.slane %v1383, 4
    %v1385 = vadd.f32 %v1383, %v1384
    %v1386 = vrot.slane %v1385, 2
    %v1387 = vadd.f32 %v1385, %v1386
    %v1388 = vrot.slane %v1387, 1
    %v1389 = vadd.f32 %v1387, %v1388
    %v1390 = vadd.f32 %v1389, %v1372
    %s1391 = scalar_lea.vmem [#allocation16], 2
    %1392 = vst [vmem:[%s1391 - $0x7] sm:$0x80] %v1368
    %1393 = vst [vmem:[%s1391 + $0x1] sm:$0x1] %v1390
    // Predicated region
    $region90: #{tpu_custom_call.1} parent=1 // pred_check
      _
    $region91: #{tpu_custom_call.1} parent=1 // pred_check_branch
      %1395 = sbr.rel (0) target = $region93
    $region92: #{tpu_custom_call.1} parent=1 // pred_region
      %s1397 = ssub.s32 64, 64
      %1398 = vsyncadd [#allocation6], %s1397
      %s1399 = sshll.u32 [#allocation16], 4
      %s1400 = int_to_ptr.vmem [resolvable:$true] %s1399
      %1405 = dma.vmem_to_hbm [thread:$0]  %s1400, 64, %s15, [#allocation6], 32, 32, 2
    $region93: #{tpu_custom_call.1} parent=1 // pred_fallthru
      _
    // Predicated region
    $region94: #{tpu_custom_call.1} parent=1 // pred_check
      _
    $region95: #{tpu_custom_call.1} parent=1 // pred_check_branch
      %1407 = sbr.rel (0) target = $region97
    $region96: #{tpu_custom_call.1} parent=1 // pred_region
      %1408 = dma.done [#allocation6], 64
    $region97: #{tpu_custom_call.1} parent=1 // pred_fallthru
      _
    %1409 = vsyncpa [#allocation5], 1
    %1410 = vsyncpa [#allocation8], 1
    %1411 = vsyncpa [#allocation11], 1
    %1412 = vsyncpa [#allocation14], 1
    %1413 = vsyncpa [#allocation6], 1

</llo_original>
